<compile_context>
chip_gen: v7x
topology: tpu7x:2x2x1
jax: 0.10.0
libtpu: 0.0.40
codegen_flags: <defaults>
</compile_context>

<pallas_src>
import jax
import jax.numpy as jnp
from jax.experimental import pallas as pl
from jax.experimental.pallas import tpu as pltpu


# ----------------------------------------------------------------------------------
# Fused kernel: adaLN (SiLU -> Linear) + LayerNorm + modulate + final Linear
# ----------------------------------------------------------------------------------
def _final_layer_kernel(c_ref, ada_w_ref, ada_b_ref, x_ref, w_ref, b_ref,
                        o_ref, ada_sc):
    j = pl.program_id(1)
    D = x_ref.shape[-1]

    # adaLN modulation for this sequence: computed once (token-tile j == 0) and kept
    # resident in VMEM scratch across the inner (token) grid axis.
    @pl.when(j == 0)
    def _():
        cv = c_ref[0]                                        # (1, D) f32
        cs = cv * jax.nn.sigmoid(cv)                         # SiLU, f32
        ada_sc[...] = (
            jnp.dot(cs.astype(jnp.bfloat16), ada_w_ref[...],
                    preferred_element_type=jnp.float32)
            + ada_b_ref[...])                                # (1, 2D) f32

    ada = ada_sc[...]                                        # (1, 2D)
    shift = ada[:, :D]                                       # (1, D)
    scale = ada[:, D:]                                       # (1, D)

    # LayerNorm (eps=1e-6, no affine, biased variance -> matches PyTorch) in f32.
    x = x_ref[0]                                             # (tl, D) f32
    mean = jnp.mean(x, axis=-1, keepdims=True)
    xc = x - mean
    var = jnp.mean(xc * xc, axis=-1, keepdims=True)
    xn = xc * jax.lax.rsqrt(var + 1e-6)

    # modulate (broadcast of per-sequence shift/scale happens in-register, not in HBM)
    xm = xn * (1.0 + scale) + shift                          # (tl, D) f32

    # Final linear: bf16 operands, f32 MXU accumulation, lane-dense (padded) output.
    out = (jnp.dot(xm.astype(jnp.bfloat16), w_ref[...],
                   preferred_element_type=jnp.float32)
           + b_ref[...])                                     # (tl, Npad) f32
    o_ref[0] = out


def final_layer_forward(x, c, params):
    """x: [B, T, D] f32 tokens, c: [B, D] f32 conditioning -> [B, T, p*p*out_ch] f32."""
    B, T, D = x.shape
    ada_w, ada_b = params['ada_w'], params['ada_b']          # [D, 2D], [2D]
    w, b = params['w'], params['b']                          # [D, N],  [N]
    N = w.shape[1]

    # Pad the output width to a multiple of 128 lanes for unmasked full-lane stores.
    n_pad = -(-N // 128) * 128
    w_p = jnp.zeros((D, n_pad), jnp.float32).at[:, :N].set(w).astype(jnp.bfloat16)
    b_p = jnp.zeros((1, n_pad), jnp.float32).at[0, :N].set(b)
    ada_w_bf = ada_w.astype(jnp.bfloat16)
    ada_b2 = ada_b.reshape(1, 2 * D).astype(jnp.float32)
    c3 = c.reshape(B, 1, D).astype(jnp.float32)

    # Largest convenient token tile that divides T (big tiles amortize per-step overhead).
    tl = T
    for cand in (1024, 512, 256, 128, 64, 32, 16, 8):
        if T % cand == 0:
            tl = cand
            break
    n_tj = T // tl

    out = pl.pallas_call(
        _final_layer_kernel,
        out_shape=jax.ShapeDtypeStruct((B, T, n_pad), jnp.float32),
        grid_spec=pltpu.PrefetchScalarGridSpec(
            num_scalar_prefetch=0,
            grid=(B, n_tj),
            in_specs=[
                pl.BlockSpec((1, 1, D), lambda i, j: (i, 0, 0)),      # c (per sequence)
                pl.BlockSpec((D, 2 * D), lambda i, j: (0, 0)),        # adaLN weight (bf16)
                pl.BlockSpec((1, 2 * D), lambda i, j: (0, 0)),        # adaLN bias (f32)
                pl.BlockSpec((1, tl, D), lambda i, j: (i, j, 0)),     # x token tile
                pl.BlockSpec((D, n_pad), lambda i, j: (0, 0)),        # final weight (bf16)
                pl.BlockSpec((1, n_pad), lambda i, j: (0, 0)),        # final bias (f32)
            ],
            out_specs=pl.BlockSpec((1, tl, n_pad), lambda i, j: (i, j, 0)),
            scratch_shapes=[pltpu.VMEM((1, 2 * D), jnp.float32)],     # resident adaLN vec
        ),
        compiler_params=pltpu.CompilerParams(
            dimension_semantics=("parallel", "arbitrary"),
            vmem_limit_bytes=64 * 1024 * 1024),
    )(c3, ada_w_bf, ada_b2, x.astype(jnp.float32), w_p, b_p)

    return out[:, :, :N]   # drop the lane padding (glue)


# ----------------------------------------------------------------------------------
# Pure-JAX reference (f32) for validation
# ----------------------------------------------------------------------------------
def final_layer_ref(x, c, params):
    D = x.shape[-1]
    ada = jax.nn.silu(c) @ params['ada_w'] + params['ada_b']
    shift, scale = ada[:, :D], ada[:, D:]
    mean = jnp.mean(x, axis=-1, keepdims=True)
    var = jnp.mean((x - mean) ** 2, axis=-1, keepdims=True)
    xn = (x - mean) * jax.lax.rsqrt(var + 1e-6)
    xm = xn * (1.0 + scale[:, None, :]) + shift[:, None, :]
    return xm @ params['w'] + params['b']


# ----------------------------------------------------------------------------------
if __name__ == "__main__":
    # Shapes consistent with the OccDiT config: hidden=128, patch=2, out_ch=2*4=8
    B, T, D = 2, 512, 128
    patch_size, out_channels = 2, 8
    N = patch_size * patch_size * out_channels               # 32

    key = jax.random.PRNGKey(0)
    kx, kc, k1, k2, k3, k4 = jax.random.split(key, 6)

    x = jax.random.normal(kx, (B, T, D), jnp.float32)
    c = jax.random.normal(kc, (B, D), jnp.float32)

    # Deterministic synthetic weights (the reference zero-inits these in the full DiT;
    # non-zero weights here so the kernel path is actually exercised).
    params = {
        'ada_w': 0.02 * jax.random.normal(k1, (D, 2 * D), jnp.float32),
        'ada_b': 0.01 * jax.random.normal(k2, (2 * D,), jnp.float32),
        'w': 0.02 * jax.random.normal(k3, (D, N), jnp.float32),
        'b': 0.01 * jax.random.normal(k4, (N,), jnp.float32),
    }

    fwd = jax.jit(final_layer_forward)
    out = jax.block_until_ready(fwd(x, c, params))

    assert out.shape == (B, T, N), out.shape
    assert bool(jnp.all(jnp.isfinite(out)))

    # Validate against the f32 reference (bf16 matmul operands -> relaxed tolerance).
    ref = final_layer_ref(x, c, params)
    err = float(jnp.max(jnp.abs(out - ref)))
    scale = float(jnp.max(jnp.abs(ref))) + 1e-6
    assert err <= 5e-2 * scale + 1e-3, (err, scale)

    print("KERNEL_OK")
</pallas_src>

<mosaic_0001>
module attributes {stable_mosaic.version = 11 : i64} {
  func.func @_final_layer_kernel(%arg0: i32, %arg1: i32, %arg2: memref<1x1x128xf32, #tpu.memory_space<vmem>>, %arg3: memref<128x256xbf16, #tpu.memory_space<vmem>>, %arg4: memref<1x256xf32, #tpu.memory_space<vmem>>, %arg5: memref<1x512x128xf32, #tpu.memory_space<vmem>>, %arg6: memref<128x128xbf16, #tpu.memory_space<vmem>>, %arg7: memref<1x128xf32, #tpu.memory_space<vmem>>, %arg8: memref<1x512x128xf32, #tpu.memory_space<vmem>>, %arg9: memref<1x256xf32, #tpu.memory_space<vmem>>) attributes {dimension_semantics = [#tpu.dimension_semantics<parallel>, #tpu.dimension_semantics<arbitrary>], iteration_bounds = array<i64: 2, 1>, scalar_prefetch = 0 : i64, scratch_operands = 1 : i64, tpu.core_type = #tpu.core_type<tc>, window_params = [{transform_indices = @transform_0, window_bounds = array<i64: 1, 1, 128>}, {pipeline_mode = #tpu.pipeline_mode<synchronous>, transform_indices = @transform_1, window_bounds = array<i64: 128, 256>}, {pipeline_mode = #tpu.pipeline_mode<synchronous>, transform_indices = @transform_2, window_bounds = array<i64: 1, 256>}, {transform_indices = @transform_3, window_bounds = array<i64: 1, 512, 128>}, {pipeline_mode = #tpu.pipeline_mode<synchronous>, transform_indices = @transform_4, window_bounds = array<i64: 128, 128>}, {pipeline_mode = #tpu.pipeline_mode<synchronous>, transform_indices = @transform_5, window_bounds = array<i64: 1, 128>}, {transform_indices = @transform_6, window_bounds = array<i64: 1, 512, 128>}]} {
    %c0_i32 = arith.constant 0 : i32
    %0 = arith.cmpi eq, %arg1, %c0_i32 : i32
    %1 = arith.extui %0 : i1 to i32
    %c0_i32_0 = arith.constant 0 : i32
    %2 = arith.cmpi ne, %1, %c0_i32_0 : i32
    scf.if %2 {
      %c0_18 = arith.constant 0 : index
      %c0_19 = arith.constant 0 : index
      %c0_20 = arith.constant 0 : index
      %39 = vector.load %arg2[%c0_18, %c0_19, %c0_20] : memref<1x1x128xf32, #tpu.memory_space<vmem>>, vector<1x1x128xf32>
      %40 = vector.shape_cast %39 : vector<1x1x128xf32> to vector<1x128xf32>
      %41 = arith.negf %40 : vector<1x128xf32>
      %42 = math.exp %41 : vector<1x128xf32>
      %cst_21 = arith.constant 1.000000e+00 : f32
      %43 = vector.broadcast %cst_21 : f32 to vector<1x128xf32>
      %44 = arith.addf %43, %42 : vector<1x128xf32>
      %45 = arith.divf %43, %44 : vector<1x128xf32>
      %46 = arith.mulf %40, %45 : vector<1x128xf32>
      %47 = arith.truncf %46 : vector<1x128xf32> to vector<1x128xbf16>
      %c0_22 = arith.constant 0 : index
      %c0_23 = arith.constant 0 : index
      %48 = vector.load %arg3[%c0_22, %c0_23] : memref<128x256xbf16, #tpu.memory_space<vmem>>, vector<128x256xbf16>
      %cst_24 = arith.constant dense<0.000000e+00> : vector<1x256xf32>
      %49 = tpu.matmul %47, %48, %cst_24 {dimension_numbers = #tpu.dot_dimension_numbers<[1], [0], [0], [1], [0, 0, 1, 1], [], []>} : vector<1x128xbf16>, vector<128x256xbf16>, vector<1x256xf32> -> vector<1x256xf32>
      %c0_25 = arith.constant 0 : index
      %c0_26 = arith.constant 0 : index
      %50 = vector.load %arg4[%c0_25, %c0_26] : memref<1x256xf32, #tpu.memory_space<vmem>>, vector<1x256xf32>
      %51 = arith.addf %49, %50 : vector<1x256xf32>
      %c0_27 = arith.constant 0 : index
      %c0_28 = arith.constant 0 : index
      %52 = vector.load %arg9[%c0_27, %c0_28] : memref<1x256xf32, #tpu.memory_space<vmem>>, vector<1x256xf32>
      tpu.vector_store %arg9[%c0_27, %c0_28], %51 {strides = array<i32>} : memref<1x256xf32, #tpu.memory_space<vmem>>, vector<1x256xf32>,
    } else {
    }
    %c0 = arith.constant 0 : index
    %c0_1 = arith.constant 0 : index
    %3 = vector.load %arg9[%c0, %c0_1] : memref<1x256xf32, #tpu.memory_space<vmem>>, vector<1x256xf32>
    %4 = vector.extract_strided_slice %3 {offsets = [0, 0], sizes = [1, 128], strides = [1, 1]} : vector<1x256xf32> to vector<1x128xf32>
    %5 = vector.extract_strided_slice %3 {offsets = [0, 128], sizes = [1, 128], strides = [1, 1]} : vector<1x256xf32> to vector<1x128xf32>
    %c0_2 = arith.constant 0 : index
    %c0_3 = arith.constant 0 : index
    %c0_4 = arith.constant 0 : index
    %6 = vector.load %arg5[%c0_2, %c0_3, %c0_4] : memref<1x512x128xf32, #tpu.memory_space<vmem>>, vector<1x512x128xf32>
    %7 = vector.shape_cast %6 : vector<1x512x128xf32> to vector<512x128xf32>
    %cst = arith.constant dense<0.000000e+00> : vector<512xf32>
    %8 = vector.multi_reduction <add>, %7, %cst [1] : vector<512x128xf32> to vector<512xf32>
    %9 = vector.shape_cast %8 : vector<512xf32> to vector<512x1xf32>
    %cst_5 = arith.constant 1.280000e+02 : f32
    %10 = vector.broadcast %cst_5 : f32 to vector<512x1xf32>
    %11 = arith.divf %9, %10 : vector<512x1xf32>
    %12 = vector.broadcast %11 : vector<512x1xf32> to vector<512x128xf32>
    %13 = arith.subf %7, %12 : vector<512x128xf32>
    %14 = arith.mulf %13, %13 : vector<512x128xf32>
    %cst_6 = arith.constant dense<0.000000e+00> : vector<512xf32>
    %15 = vector.multi_reduction <add>, %14, %cst_6 [1] : vector<512x128xf32> to vector<512xf32>
    %16 = vector.shape_cast %15 : vector<512xf32> to vector<512x1xf32>
    %cst_7 = arith.constant 1.280000e+02 : f32
    %17 = vector.broadcast %cst_7 : f32 to vector<512x1xf32>
    %18 = arith.divf %16, %17 : vector<512x1xf32>
    %cst_8 = arith.constant 9.99999997E-7 : f32
    %19 = vector.broadcast %cst_8 : f32 to vector<512x1xf32>
    %20 = arith.addf %18, %19 : vector<512x1xf32>
    %21 = math.rsqrt %20 : vector<512x1xf32>
    %22 = vector.broadcast %21 : vector<512x1xf32> to vector<512x128xf32>
    %23 = arith.mulf %13, %22 : vector<512x128xf32>
    %cst_9 = arith.constant 1.000000e+00 : f32
    %24 = vector.broadcast %cst_9 : f32 to vector<1x128xf32>
    %25 = arith.addf %24, %5 : vector<1x128xf32>
    %26 = vector.broadcast %25 : vector<1x128xf32> to vector<512x128xf32>
    %27 = arith.mulf %23, %26 : vector<512x128xf32>
    %28 = vector.broadcast %4 : vector<1x128xf32> to vector<512x128xf32>
    %29 = arith.addf %27, %28 : vector<512x128xf32>
    %30 = arith.truncf %29 : vector<512x128xf32> to vector<512x128xbf16>
    %c0_10 = arith.constant 0 : index
    %c0_11 = arith.constant 0 : index
    %31 = vector.load %arg6[%c0_10, %c0_11] : memref<128x128xbf16, #tpu.memory_space<vmem>>, vector<128x128xbf16>
    %cst_12 = arith.constant dense<0.000000e+00> : vector<512x128xf32>
    %32 = tpu.matmul %30, %31, %cst_12 {dimension_numbers = #tpu.dot_dimension_numbers<[1], [0], [0], [1], [0, 0, 1, 1], [], []>} : vector<512x128xbf16>, vector<128x128xbf16>, vector<512x128xf32> -> vector<512x128xf32>
    %c0_13 = arith.constant 0 : index
    %c0_14 = arith.constant 0 : index
    %33 = vector.load %arg7[%c0_13, %c0_14] : memref<1x128xf32, #tpu.memory_space<vmem>>, vector<1x128xf32>
    %34 = vector.broadcast %33 : vector<1x128xf32> to vector<512x128xf32>
    %35 = arith.addf %32, %34 : vector<512x128xf32>
    %c0_15 = arith.constant 0 : index
    %c0_16 = arith.constant 0 : index
    %c0_17 = arith.constant 0 : index
    %36 = vector.load %arg8[%c0_15, %c0_16, %c0_17] : memref<1x512x128xf32, #tpu.memory_space<vmem>>, vector<1x512x128xf32>
    %37 = vector.shape_cast %36 : vector<1x512x128xf32> to vector<512x128xf32>
    %38 = vector.shape_cast %35 : vector<512x128xf32> to vector<1x512x128xf32>
    tpu.vector_store %arg8[%c0_15, %c0_16, %c0_17], %38 {strides = array<i32>} : memref<1x512x128xf32, #tpu.memory_space<vmem>>, vector<1x512x128xf32>,
    return
  }
  func.func @transform_0(%arg0: i32, %arg1: i32) -> (i32, i32, i32) {
    %c0_i32 = arith.constant 0 : i32
    %c0_i32_0 = arith.constant 0 : i32
    %c0_i32_1 = arith.constant 0 : i32
    return %arg0, %c0_i32, %c0_i32_0 : i32, i32, i32
  }
  func.func @transform_1(%arg0: i32, %arg1: i32) -> (i32, i32) {
    %c0_i32 = arith.constant 0 : i32
    %c0_i32_0 = arith.constant 0 : i32
    %c0_i32_1 = arith.constant 0 : i32
    return %c0_i32, %c0_i32_0 : i32, i32
  }
  func.func @transform_2(%arg0: i32, %arg1: i32) -> (i32, i32) {
    %c0_i32 = arith.constant 0 : i32
    %c0_i32_0 = arith.constant 0 : i32
    %c0_i32_1 = arith.constant 0 : i32
    return %c0_i32, %c0_i32_0 : i32, i32
  }
  func.func @transform_3(%arg0: i32, %arg1: i32) -> (i32, i32, i32) {
    %c0_i32 = arith.constant 0 : i32
    %c0_i32_0 = arith.constant 0 : i32
    return %arg0, %arg1, %c0_i32 : i32, i32, i32
  }
  func.func @transform_4(%arg0: i32, %arg1: i32) -> (i32, i32) {
    %c0_i32 = arith.constant 0 : i32
    %c0_i32_0 = arith.constant 0 : i32
    %c0_i32_1 = arith.constant 0 : i32
    return %c0_i32, %c0_i32_0 : i32, i32
  }
  func.func @transform_5(%arg0: i32, %arg1: i32) -> (i32, i32) {
    %c0_i32 = arith.constant 0 : i32
    %c0_i32_0 = arith.constant 0 : i32
    %c0_i32_1 = arith.constant 0 : i32
    return %c0_i32, %c0_i32_0 : i32, i32
  }
  func.func @transform_6(%arg0: i32, %arg1: i32) -> (i32, i32, i32) {
    %c0_i32 = arith.constant 0 : i32
    %c0_i32_0 = arith.constant 0 : i32
    return %arg0, %arg1, %c0_i32 : i32, i32, i32
  }
}

</mosaic_0001>

<llo_original>
// kernel: final_layer_forward.1
$region0: #{final_layer_forward.1}
  #allocation0 [shape = 'u32[]', space=smem, size = 0x4, offset = 0x4, fixed_abs, tag = 'smem constant byte address 0x4 - core index']
  #allocation1 [shape = 'u32[144,128]{1,0:T(1,128)}', space=vmem, size = 0x12000, scoped, tag = 'internal scratch']
  #allocation2 [shape = 'f32[1,256]{1,0:T(1,128)}', space=vmem, size = 0x400, scoped, tag = 'scratch operand']
  %s0 = inlined_call_operand.hbm [shape: f32[2,1,128], index: 0, kind: input, shape index: {}]
  %s1 = inlined_call_operand.hbm [shape: bf16[128,256], index: 1, kind: input, shape index: {}]
  %s2 = inlined_call_operand.hbm [shape: f32[1,256], index: 2, kind: input, shape index: {}]
  %s3 = inlined_call_operand.hbm [shape: f32[2,512,128], index: 3, kind: input, shape index: {}]
  %s4 = inlined_call_operand.hbm [shape: bf16[128,128], index: 4, kind: input, shape index: {}]
  %s5 = inlined_call_operand.hbm [shape: f32[1,128], index: 5, kind: input, shape index: {}]
  %s6 = inlined_call_operand.hbm [shape: f32[2,512,128], index: 6, kind: output, shape index: {}]
  %s7 = sld [smem:[#allocation0]]
  $region85: #{final_layer_forward.1} parent=0
    _
  %s9 = ssub.s32 1, %s7
  %s10 = scalar_select 0, %s9, %s7
  $region1: #{final_layer_forward.1} parent=0
    #allocation3 [shape = 'u8[1024]{0}', space=vmem, size = 0x400, scoped, tag = 'input window, operand 0']
    #allocation4 [shape = 's32[2]{0}', space=sflag, size = 0x8, scoped, tag = 'scoped memory for final_layer_forward.1']
    #allocation5 [shape = 's32[2]{0}', space=sflag, size = 0x8, scoped, tag = 'scoped memory for final_layer_forward.1']
    #allocation6 [shape = 'u8[65536]{0}', space=vmem, size = 0x10000, scoped, tag = 'input window, operand 1, single buffered']
    #allocation7 [shape = 's32[1]{0}', space=sflag, size = 0x4, scoped, tag = 'scoped memory for final_layer_forward.1']
    #allocation8 [shape = 'u8[1024]{0}', space=vmem, size = 0x400, scoped, tag = 'input window, operand 2, single buffered']
    #allocation9 [shape = 'u8[524288]{0}', space=vmem, size = 0x80000, scoped, tag = 'input window, operand 3']
    #allocation10 [shape = 's32[2]{0}', space=sflag, size = 0x8, scoped, tag = 'scoped memory for final_layer_forward.1']
    #allocation11 [shape = 'u8[32768]{0}', space=vmem, size = 0x8000, scoped, tag = 'input window, operand 4, single buffered']
    #allocation12 [shape = 'u8[512]{0}', space=vmem, size = 0x400, scoped, tag = 'input window, operand 5, single buffered']
    #allocation13 [shape = 's32[1]{0}', space=sflag, size = 0x4, scoped, tag = 'scoped memory for final_layer_forward.1']
    #allocation14 [shape = 'u8[524288]{0}', space=vmem, size = 0x80000, scoped, tag = 'output window, operand 0']
    %11 = vsyncpa [#allocation4], 0
    %s12 = scalar_lea.sflag [#allocation4], 1
    %13 = vsyncpa %s12, 0
    %14 = vsyncpa [#allocation7], 0
    %15 = vsyncpa [#allocation10], 0
    %s16 = scalar_lea.sflag [#allocation10], 1
    %17 = vsyncpa %s16, 0
    %18 = vsyncpa [#allocation13], 0
    %19 = vsyncpa [#allocation5], 0
    %s20 = scalar_lea.sflag [#allocation5], 1
    %21 = vsyncpa %s20, 0
    loop: start=0, step=1, limit=4
    $region2: #{final_layer_forward.1} parent=1 // loop_pre_header
      _
    $region3: #{final_layer_forward.1} parent=1 // loop_header
      %s23 = sphi 0, %s27
      %p24 = scmp.ge.s32.totalorder %s23, 4
      %s30 = sphi 0, %s42
      %s31 = sphi 0, %s38
      %s32 = sphi 0, %s30
      %s33 = sphi 0, %s31
      %s34 = sphi 0, %s32
      %s35 = sphi 0, %s33
      %s45 = sphi 0, %s47
      %s48 = sphi 0, %s45
      %s49 = sphi 0, %s48
      %s65 = sphi 0, %s49
      %s69 = sphi 0, %s69
      %s71 = sphi 0, %s69
      %s72 = sphi 0, %s71
      %s86 = sphi 0, %s72
      %s90 = sphi 0, %s90
      %s92 = sphi 0, %s90
      %s93 = sphi 0, %s92
      %s107 = sphi 0, %s93
      %s115 = sphi 0, %s117
      %s118 = sphi 0, %s115
      %s119 = sphi 0, %s118
      %s135 = sphi 0, %s119
      %s139 = sphi 0, %s139
      %s141 = sphi 0, %s139
      %s142 = sphi 0, %s141
      %s156 = sphi 0, %s142
      %s160 = sphi 0, %s160
      %s162 = sphi 0, %s160
      %s163 = sphi 0, %s162
      %s177 = sphi 0, %s163
      %s185 = sphi 0, %s187
      %s188 = sphi 0, %s185
      %s189 = sphi 0, %s188
      %s205 = sphi 0, %s189
    $region4: #{final_layer_forward.1} parent=1 // loop_header_branch
      %26 = sbr.rel (%p24) target = $region8
    $region5: #{final_layer_forward.1} parent=1 // loop_body
      %s28 = ssub.s32 %s23, 1
      %s29 = ssub.s32 %s23, 2
      %s36 = sadd.s32 1, %s31
      %p37 = scmp.ge.s32.totalorder %s36, 1
      %s38 = scalar_select %p37, 0, %s36
      %s39 = sadd.s32 1, %s30
      %s40 = scalar_select %p37, %s39, %s30
      %p41 = scmp.ge.s32.totalorder %s40, 2
      %s42 = scalar_select %p41, 0, %s40
      %s43 = ssub.s32 %s30, %s42
      %p44 = scmp.eq.s32.totalorder %s43, 0
      %s46 = sadd.s32 %s45, 1
      %s47 = scalar_select %p44, %s45, %s46
      %p50 = pneg %p44
      %p51 = scmp.eq.s32.totalorder %s23, 1
      %p52 = por %p50, %p51
      %p53 = scmp.ne.s32.totalorder %s45, %s48
      %p54 = scmp.eq.s32.totalorder %s23, 0
      %p55 = por %p53, %p54
      %p56 = scmp.ne.s32.totalorder %s45, %s48
      %p57 = scmp.eq.s32.totalorder %s28, 1
      %p58 = por %p56, %p57
      %p59 = scmp.ne.s32.totalorder %s48, %s49
      %p60 = scmp.eq.s32.totalorder %s28, 0
      %p61 = por %p59, %p60
      %p62 = scmp.ne.s32.totalorder %s48, %s49
      %p63 = scmp.eq.s32.totalorder %s29, 1
      %p64 = por %p62, %p63
      %p66 = scmp.ne.s32.totalorder %s49, %s65
      %p67 = scmp.eq.s32.totalorder %s29, 0
      %p68 = por %p66, %p67
      %s70 = sadd.s32 %s69, 1
      %p73 = scmp.eq.s32.totalorder %s23, 1
      %p74 = scmp.ne.s32.totalorder %s69, %s71
      %p75 = scmp.eq.s32.totalorder %s23, 0
      %p76 = por %p74, %p75
      %p77 = scmp.ne.s32.totalorder %s69, %s71
      %p78 = scmp.eq.s32.totalorder %s28, 1
      %p79 = por %p77, %p78
      %p80 = scmp.ne.s32.totalorder %s71, %s72
      %p81 = scmp.eq.s32.totalorder %s28, 0
      %p82 = por %p80, %p81
      %p83 = scmp.ne.s32.totalorder %s71, %s72
      %p84 = scmp.eq.s32.totalorder %s29, 1
      %p85 = por %p83, %p84
      %p87 = scmp.ne.s32.totalorder %s72, %s86
      %p88 = scmp.eq.s32.totalorder %s29, 0
      %p89 = por %p87, %p88
      %s91 = sadd.s32 %s90, 1
      %p94 = scmp.eq.s32.totalorder %s23, 1
      %p95 = scmp.ne.s32.totalorder %s90, %s92
      %p96 = scmp.eq.s32.totalorder %s23, 0
      %p97 = por %p95, %p96
      %p98 = scmp.ne.s32.totalorder %s90, %s92
      %p99 = scmp.eq.s32.totalorder %s28, 1
      %p100 = por %p98, %p99
      %p101 = scmp.ne.s32.totalorder %s92, %s93
      %p102 = scmp.eq.s32.totalorder %s28, 0
      %p103 = por %p101, %p102
      %p104 = scmp.ne.s32.totalorder %s92, %s93
      %p105 = scmp.eq.s32.totalorder %s29, 1
      %p106 = por %p104, %p105
      %p108 = scmp.ne.s32.totalorder %s93, %s107
      %p109 = scmp.eq.s32.totalorder %s29, 0
      %p110 = por %p108, %p109
      %s111 = ssub.s32 %s30, %s42
      %s112 = ssub.s32 %s31, %s38
      %s113 = sor.u32 %s111, %s112
      %p114 = scmp.eq.s32.totalorder %s113, 0
      %s116 = sadd.s32 %s115, 1
      %s117 = scalar_select %p114, %s115, %s116
      %p120 = pneg %p114
      %p121 = scmp.eq.s32.totalorder %s23, 1
      %p122 = por %p120, %p121
      %p123 = scmp.ne.s32.totalorder %s115, %s118
      %p124 = scmp.eq.s32.totalorder %s23, 0
      %p125 = por %p123, %p124
      %p126 = scmp.ne.s32.totalorder %s115, %s118
      %p127 = scmp.eq.s32.totalorder %s28, 1
      %p128 = por %p126, %p127
      %p129 = scmp.ne.s32.totalorder %s118, %s119
      %p130 = scmp.eq.s32.totalorder %s28, 0
      %p131 = por %p129, %p130
      %p132 = scmp.ne.s32.totalorder %s118, %s119
      %p133 = scmp.eq.s32.totalorder %s29, 1
      %p134 = por %p132, %p133
      %p136 = scmp.ne.s32.totalorder %s119, %s135
      %p137 = scmp.eq.s32.totalorder %s29, 0
      %p138 = por %p136, %p137
      %s140 = sadd.s32 %s139, 1
      %p143 = scmp.eq.s32.totalorder %s23, 1
      %p144 = scmp.ne.s32.totalorder %s139, %s141
      %p145 = scmp.eq.s32.totalorder %s23, 0
      %p146 = por %p144, %p145
      %p147 = scmp.ne.s32.totalorder %s139, %s141
      %p148 = scmp.eq.s32.totalorder %s28, 1
      %p149 = por %p147, %p148
      %p150 = scmp.ne.s32.totalorder %s141, %s142
      %p151 = scmp.eq.s32.totalorder %s28, 0
      %p152 = por %p150, %p151
      %p153 = scmp.ne.s32.totalorder %s141, %s142
      %p154 = scmp.eq.s32.totalorder %s29, 1
      %p155 = por %p153, %p154
      %p157 = scmp.ne.s32.totalorder %s142, %s156
      %p158 = scmp.eq.s32.totalorder %s29, 0
      %p159 = por %p157, %p158
      %s161 = sadd.s32 %s160, 1
      %p164 = scmp.eq.s32.totalorder %s23, 1
      %p165 = scmp.ne.s32.totalorder %s160, %s162
      %p166 = scmp.eq.s32.totalorder %s23, 0
      %p167 = por %p165, %p166
      %p168 = scmp.ne.s32.totalorder %s160, %s162
      %p169 = scmp.eq.s32.totalorder %s28, 1
      %p170 = por %p168, %p169
      %p171 = scmp.ne.s32.totalorder %s162, %s163
      %p172 = scmp.eq.s32.totalorder %s28, 0
      %p173 = por %p171, %p172
      %p174 = scmp.ne.s32.totalorder %s162, %s163
      %p175 = scmp.eq.s32.totalorder %s29, 1
      %p176 = por %p174, %p175
      %p178 = scmp.ne.s32.totalorder %s163, %s177
      %p179 = scmp.eq.s32.totalorder %s29, 0
      %p180 = por %p178, %p179
      %s181 = ssub.s32 %s30, %s42
      %s182 = ssub.s32 %s31, %s38
      %s183 = sor.u32 %s181, %s182
      %p184 = scmp.eq.s32.totalorder %s183, 0
      %s186 = sadd.s32 %s185, 1
      %s187 = scalar_select %p184, %s185, %s186
      %p190 = pneg %p184
      %p191 = scmp.eq.s32.totalorder %s23, 1
      %p192 = por %p190, %p191
      %p193 = scmp.ne.s32.totalorder %s185, %s188
      %p194 = scmp.eq.s32.totalorder %s23, 0
      %p195 = por %p193, %p194
      %p196 = scmp.ne.s32.totalorder %s185, %s188
      %p197 = scmp.eq.s32.totalorder %s28, 1
      %p198 = por %p196, %p197
      %p199 = scmp.ne.s32.totalorder %s188, %s189
      %p200 = scmp.eq.s32.totalorder %s28, 0
      %p201 = por %p199, %p200
      %p202 = scmp.ne.s32.totalorder %s188, %s189
      %p203 = scmp.eq.s32.totalorder %s29, 1
      %p204 = por %p202, %p203
      %p206 = scmp.ne.s32.totalorder %s189, %s205
      %p207 = scmp.eq.s32.totalorder %s29, 0
      %p208 = por %p206, %p207
      %p209 = scmp.le.s32.totalorder 1, %s23
      %p210 = scmp.lt.s32.totalorder %s23, 3
      %p211 = pnand %p209, %p210
      %p212 = pneg %p211
      // Predicated region
      $region9: #{final_layer_forward.1} parent=5 // pred_check
        _
      $region10: #{final_layer_forward.1} parent=5 // pred_check_branch
        %214 = sbr.rel (%p211) target = $region12
      $region11: #{final_layer_forward.1} parent=5 // pred_region
        %s215 = ssub.s32 %s23, 1
        // Predicated region
        $region13: #{final_layer_forward.1} parent=11 // pred_check
          %p216 = pneg %p82
        $region14: #{final_layer_forward.1} parent=11 // pred_check_branch
          %218 = sbr.rel (%p216) target = $region16
        $region15: #{final_layer_forward.1} parent=11 // pred_region
          %s220 = ssub.s32 2048, 2048
          %221 = vsyncadd [#allocation7], %s220
          %s222 = sshll.u32 [#allocation6], 4
          %s223 = int_to_ptr.vmem [resolvable:$true] %s222
          %228 = dma.hbm_to_vmem [thread:$0]  %s1, 2048, %s223, [#allocation7], 128, 128, 8
        $region16: #{final_layer_forward.1} parent=11 // pred_fallthru
          _
        // Predicated region
        $region17: #{final_layer_forward.1} parent=11 // pred_check
          %p229 = pneg %p103
        $region18: #{final_layer_forward.1} parent=11 // pred_check_branch
          %231 = sbr.rel (%p229) target = $region20
        $region19: #{final_layer_forward.1} parent=11 // pred_region
          %s233 = ssub.s32 32, 32
          %234 = vsyncadd [#allocation7], %s233
          %s236 = sshll.u32 [#allocation8], 4
          %s237 = int_to_ptr.vmem [resolvable:$true] %s236
          %239 = dma.hbm_to_vmem [thread:$0]  %s2, 32, %s237, [#allocation7]
        $region20: #{final_layer_forward.1} parent=11 // pred_fallthru
          _
        // Predicated region
        $region21: #{final_layer_forward.1} parent=11 // pred_check
          %p240 = pneg %p152
        $region22: #{final_layer_forward.1} parent=11 // pred_check_branch
          %242 = sbr.rel (%p240) target = $region24
        $region23: #{final_layer_forward.1} parent=11 // pred_region
          %s244 = ssub.s32 1024, 1024
          %245 = vsyncadd [#allocation10], %s244
          %s246 = sshll.u32 [#allocation11], 4
          %s247 = int_to_ptr.vmem [resolvable:$true] %s246
          %252 = dma.hbm_to_vmem [thread:$0]  %s4, 1024, %s247, [#allocation10], 64, 64, 4
        $region24: #{final_layer_forward.1} parent=11 // pred_fallthru
          _
        // Predicated region
        $region25: #{final_layer_forward.1} parent=11 // pred_check
          %p253 = pneg %p173
        $region26: #{final_layer_forward.1} parent=11 // pred_check_branch
          %255 = sbr.rel (%p253) target = $region28
        $region27: #{final_layer_forward.1} parent=11 // pred_region
          %s257 = ssub.s32 16, 16
          %258 = vsyncadd [#allocation13], %s257
          %s260 = sshll.u32 [#allocation12], 4
          %s261 = int_to_ptr.vmem [resolvable:$true] %s260
          %263 = dma.hbm_to_vmem [thread:$0]  %s5, 16, %s261, [#allocation13]
        $region28: #{final_layer_forward.1} parent=11 // pred_fallthru
          _
      $region12: #{final_layer_forward.1} parent=5 // pred_fallthru
        _
      %p264 = scmp.lt.s32.totalorder %s23, 2
      // Predicated region
      $region29: #{final_layer_forward.1} parent=5 // pred_check
        %p265 = pneg %p264
      $region30: #{final_layer_forward.1} parent=5 // pred_check_branch
        %267 = sbr.rel (%p265) target = $region32
      $region31: #{final_layer_forward.1} parent=5 // pred_region
        // Predicated region
        $region33: #{final_layer_forward.1} parent=31 // pred_check
          %p268 = pneg %p55
        $region34: #{final_layer_forward.1} parent=31 // pred_check_branch
          %270 = sbr.rel (%p268) target = $region36
        $region35: #{final_layer_forward.1} parent=31 // pred_region
          %s271 = sand.u32 %s45, 1
          %s272 = scalar_lea.sflag [#allocation4], %s271
          %s273 = sand.u32 %s45, 1
          %s274 = scalar_lea.vmem [#allocation3], %s273
          %s276 = ssub.s32 16, 16
          %277 = vsyncadd %s272, %s276
          %s278 = smul.addr %s30, 16
          %s279 = scalar_lea.hbm %s0, %s278
          %s281 = sshll.u32 %s274, 4
          %s282 = int_to_ptr.vmem [resolvable:$true] %s281
          %284 = dma.hbm_to_vmem [thread:$0]  %s279, 16, %s282, %s272
        $region36: #{final_layer_forward.1} parent=31 // pred_fallthru
          _
        // Predicated region
        $region37: #{final_layer_forward.1} parent=31 // pred_check
          %p285 = pneg %p125
        $region38: #{final_layer_forward.1} parent=31 // pred_check_branch
          %287 = sbr.rel (%p285) target = $region40
        $region39: #{final_layer_forward.1} parent=31 // pred_region
          %s288 = sand.u32 %s23, 1
          %s289 = scalar_lea.sflag [#allocation10], %s288
          %s290 = sand.u32 %s115, 1
          %s291 = smul.addr %s290, 512
          %s292 = scalar_lea.vmem [#allocation9], %s291
          %s293 = smul.u32 64, %s31
          %s295 = ssub.s32 8192, 8192
          %296 = vsyncadd %s289, %s295
          %s297 = smul.addr %s30, 64
          %s298 = sadd.s32 %s293, %s297
          %s299 = smul.addr %s298, 128
          %s300 = scalar_lea.hbm %s3, %s299
          %s301 = sshll.u32 %s292, 4
          %s302 = int_to_ptr.vmem [resolvable:$true] %s301
          %307 = dma.hbm_to_vmem [thread:$0]  %s300, 8192, %s302, %s289, 128, 128, 8
        $region40: #{final_layer_forward.1} parent=31 // pred_fallthru
          _
      $region32: #{final_layer_forward.1} parent=5 // pred_fallthru
        _
      %p308 = scmp.le.s32.totalorder 1, %s23
      %p309 = scmp.lt.s32.totalorder %s23, 3
      %p310 = pnand %p308, %p309
      %p311 = pneg %p310
      // Predicated region
      $region41: #{final_layer_forward.1} parent=5 // pred_check
        _
      $region42: #{final_layer_forward.1} parent=5 // pred_check_branch
        %313 = sbr.rel (%p310) target = $region44
      $region43: #{final_layer_forward.1} parent=5 // pred_region
        %s314 = ssub.s32 %s23, 1
        %s315 = sand.u32 %s48, 1
        %s316 = scalar_lea.sflag [#allocation4], %s315
        %s317 = sand.u32 %s48, 1
        %s318 = scalar_lea.vmem [#allocation3], %s317
        // Predicated region
        $region45: #{final_layer_forward.1} parent=43 // pred_check
          %p319 = pneg %p61
        $region46: #{final_layer_forward.1} parent=43 // pred_check_branch
          %321 = sbr.rel (%p319) target = $region48
        $region47: #{final_layer_forward.1} parent=43 // pred_region
          %322 = dma.done %s316, 16
        $region48: #{final_layer_forward.1} parent=43 // pred_fallthru
          _
        // Predicated region
        $region49: #{final_layer_forward.1} parent=43 // pred_check
          %p323 = pneg %p82
        $region50: #{final_layer_forward.1} parent=43 // pred_check_branch
          %325 = sbr.rel (%p323) target = $region52
        $region51: #{final_layer_forward.1} parent=43 // pred_region
          %326 = dma.done [#allocation7], 2048
        $region52: #{final_layer_forward.1} parent=43 // pred_fallthru
          _
        // Predicated region
        $region53: #{final_layer_forward.1} parent=43 // pred_check
          %p327 = pneg %p103
        $region54: #{final_layer_forward.1} parent=43 // pred_check_branch
          %329 = sbr.rel (%p327) target = $region56
        $region55: #{final_layer_forward.1} parent=43 // pred_region
          %330 = dma.done [#allocation7], 32
        $region56: #{final_layer_forward.1} parent=43 // pred_fallthru
          _
        %s331 = sand.u32 %s28, 1
        %s332 = scalar_lea.sflag [#allocation10], %s331
        %s333 = sand.u32 %s118, 1
        %s334 = smul.addr %s333, 512
        %s335 = scalar_lea.vmem [#allocation9], %s334
        // Predicated region
        $region57: #{final_layer_forward.1} parent=43 // pred_check
          %p336 = pneg %p131
        $region58: #{final_layer_forward.1} parent=43 // pred_check_branch
          %338 = sbr.rel (%p336) target = $region60
        $region59: #{final_layer_forward.1} parent=43 // pred_region
          %339 = dma.done %s332, 8192
        $region60: #{final_layer_forward.1} parent=43 // pred_fallthru
          _
        // Predicated region
        $region61: #{final_layer_forward.1} parent=43 // pred_check
          %p340 = pneg %p152
        $region62: #{final_layer_forward.1} parent=43 // pred_check_branch
          %342 = sbr.rel (%p340) target = $region64
        $region63: #{final_layer_forward.1} parent=43 // pred_region
          %343 = dma.done [#allocation10], 1024
        $region64: #{final_layer_forward.1} parent=43 // pred_fallthru
          _
        // Predicated region
        $region65: #{final_layer_forward.1} parent=43 // pred_check
          %p344 = pneg %p173
        $region66: #{final_layer_forward.1} parent=43 // pred_check_branch
          %346 = sbr.rel (%p344) target = $region68
        $region67: #{final_layer_forward.1} parent=43 // pred_region
          %347 = dma.done [#allocation13], 16
        $region68: #{final_layer_forward.1} parent=43 // pred_fallthru
          _
        %s348 = sand.u32 %s48, 1
        %s349 = scalar_lea.sflag [#allocation4], %s348
        %s350 = sand.u32 %s48, 1
        %s351 = scalar_lea.vmem [#allocation3], %s350
        %p352 = pneg %p61
        %p353 = pneg %p58
        %p354 = pneg %p82
        %p355 = pneg %p79
        %p356 = pneg %p103
        %p357 = pneg %p100
        %s358 = sand.u32 %s28, 1
        %s359 = scalar_lea.sflag [#allocation10], %s358
        %s360 = sand.u32 %s118, 1
        %s361 = smul.addr %s360, 512
        %s362 = scalar_lea.vmem [#allocation9], %s361
        %p363 = pneg %p131
        %p364 = pneg %p128
        %p365 = pneg %p152
        %p366 = pneg %p149
        %p367 = pneg %p173
        %p368 = pneg %p170
        %p369 = pneg %p201
        %p370 = pneg %p198
        %s371 = sand.u32 %s188, 1
        %s372 = scalar_lea.sflag [#allocation5], %s371
        %s373 = sand.u32 %s188, 1
        %s374 = smul.addr %s373, 512
        %s375 = scalar_lea.vmem [#allocation14], %s374
        %s376 = smul.u32 64, %s33
        %s377 = smul.u32 64, %s33
        %p379 = scmp.eq.s32.totalorder %s33, 0
        // Predicated region
        $region69: #{final_layer_forward.1} parent=43 // pred_check
          %p380 = pneg %p379
        $region70: #{final_layer_forward.1} parent=43 // pred_check_branch
          %382 = sbr.rel (%p380) target = $region72
        $region71: #{final_layer_forward.1} parent=43 // pred_region
          %v383 = vld [vmem:[%s318] sm:$0x1]
          %v384 = vxor.u32 %v383, 2147483648
          %v385 = vmul.f32 %v384, 1.442695
          %v386 = vpow.pop %v385
          %v387 = vadd.f32 %v386, 1.0
          %v388 = vrcp.pop %v387
          %v389 = vmul.f32 1.0, %v388
          %v390 = vmul.f32 %v383, %v389
          %v391 = vpack.c.bf16 %v390, %v390
          %v392 = vld [vmem:[#allocation6] sm:$0xff]
          %v393 = vld [vmem:[#allocation6 + $0x8] sm:$0xff]
          %v394 = vld [vmem:[#allocation6 + $0x10] sm:$0xff]
          %v395 = vld [vmem:[#allocation6 + $0x18] sm:$0xff]
          %v396 = vld [vmem:[#allocation6 + $0x20] sm:$0xff]
          %v397 = vld [vmem:[#allocation6 + $0x28] sm:$0xff]
          %v398 = vld [vmem:[#allocation6 + $0x30] sm:$0xff]
          %v399 = vld [vmem:[#allocation6 + $0x38] sm:$0xff]
          %v400 = vld [vmem:[#allocation6 + $0x40] sm:$0xff]
          %v401 = vld [vmem:[#allocation6 + $0x48] sm:$0xff]
          %v402 = vld [vmem:[#allocation6 + $0x50] sm:$0xff]
          %v403 = vld [vmem:[#allocation6 + $0x58] sm:$0xff]
          %v404 = vld [vmem:[#allocation6 + $0x60] sm:$0xff]
          %v405 = vld [vmem:[#allocation6 + $0x68] sm:$0xff]
          %v406 = vld [vmem:[#allocation6 + $0x70] sm:$0xff]
          %v407 = vld [vmem:[#allocation6 + $0x78] sm:$0xff]
          %v408 = vld [vmem:[#allocation8] sm:$0x3]
          %v425 = vunpack.c.l.b16 %v392
          %v426 = vunpack.c.h.b16 %v392
          %v427 = vunpack.c.l.b16 %v393
          %v428 = vunpack.c.h.b16 %v393
          %v429 = vunpack.c.l.b16 %v394
          %v430 = vunpack.c.h.b16 %v394
          %v431 = vunpack.c.l.b16 %v395
          %v432 = vunpack.c.h.b16 %v395
          %v433 = vunpack.c.l.b16 %v396
          %v434 = vunpack.c.h.b16 %v396
          %v435 = vunpack.c.l.b16 %v397
          %v436 = vunpack.c.h.b16 %v397
          %v437 = vunpack.c.l.b16 %v398
          %v438 = vunpack.c.h.b16 %v398
          %v439 = vunpack.c.l.b16 %v399
          %v440 = vunpack.c.h.b16 %v399
          %v441 = vunpack.c.l.b16 %v400
          %v442 = vunpack.c.h.b16 %v400
          %v443 = vunpack.c.l.b16 %v401
          %v444 = vunpack.c.h.b16 %v401
          %v445 = vunpack.c.l.b16 %v402
          %v446 = vunpack.c.h.b16 %v402
          %v447 = vunpack.c.l.b16 %v403
          %v448 = vunpack.c.h.b16 %v403
          %v449 = vunpack.c.l.b16 %v404
          %v450 = vunpack.c.h.b16 %v404
          %v451 = vunpack.c.l.b16 %v405
          %v452 = vunpack.c.h.b16 %v405
          %v453 = vunpack.c.l.b16 %v406
          %v454 = vunpack.c.h.b16 %v406
          %v455 = vunpack.c.l.b16 %v407
          %v456 = vunpack.c.h.b16 %v407
          %v457 = vpack.c.b16 %v427, %v425
          %v458 = vpack.c.b16 %v428, %v426
          %v459 = vpack.c.b16 %v431, %v429
          %v460 = vpack.c.b16 %v432, %v430
          %v461 = vpack.c.b16 %v435, %v433
          %v462 = vpack.c.b16 %v436, %v434
          %v463 = vpack.c.b16 %v439, %v437
          %v464 = vpack.c.b16 %v440, %v438
          %v465 = vpack.c.b16 %v443, %v441
          %v466 = vpack.c.b16 %v444, %v442
          %v467 = vpack.c.b16 %v447, %v445
          %v468 = vpack.c.b16 %v448, %v446
          %v469 = vpack.c.b16 %v451, %v449
          %v470 = vpack.c.b16 %v452, %v450
          %v471 = vpack.c.b16 %v455, %v453
          %v472 = vpack.c.b16 %v456, %v454
          %v490 = vlaneseq
          %v491 = vshrl.u32 %v490, 7
          %v492 = vsub.s32 0, %v491
          %v493 = vrot.slane %v408, %v492
          %v494 = vlaneseq
          %v495 = vshrl.u32 %v494, 7
          %v496 = vsub.s32 1, %v495
          %v497 = vrot.slane %v408, %v496
          %500 = vmatprep.subr.bf16.mxu0 %v458
          %501 = vmatpush1.bf16.msra.mxu0 %v457
          %502 = vmatprep.subr.bf16.mxu0 %v460
          %503 = vmatpush1.bf16.msra.mxu0 %v459
          %504 = vmatprep.subr.bf16.mxu0 %v462
          %505 = vmatpush1.bf16.msra.mxu0 %v461
          %506 = vmatprep.subr.bf16.mxu0 %v464
          %507 = vmatpush1.bf16.msra.mxu0 %v463
          %508 = vmatprep.subr.bf16.mxu0 %v466
          %509 = vmatpush1.bf16.msra.mxu0 %v465
          %510 = vmatprep.subr.bf16.mxu0 %v468
          %511 = vmatpush1.bf16.msra.mxu0 %v467
          %512 = vmatprep.subr.bf16.mxu0 %v470
          %513 = vmatpush1.bf16.msra.mxu0 %v469
          %514 = vmatprep.subr.bf16.mxu0 %v472
          %515 = vmatpush1.bf16.msra.mxu0 %v471
          %516 = vmatprep.subr.bf16.mxu0 0
          %517 = vmatpush1.bf16.msra.mxu0 0
          %518 = vmatprep.subr.bf16.mxu0 0
          %519 = vmatpush1.bf16.msra.mxu0 0
          %520 = vmatprep.subr.bf16.mxu0 0
          %521 = vmatpush1.bf16.msra.mxu0 0
          %522 = vmatprep.subr.bf16.mxu0 0
          %523 = vmatpush1.bf16.msra.mxu0 0
          %524 = vmatprep.subr.bf16.mxu0 0
          %525 = vmatpush1.bf16.msra.mxu0 0
          %526 = vmatprep.subr.bf16.mxu0 0
          %527 = vmatpush1.bf16.msra.mxu0 0
          %528 = vmatprep.subr.bf16.mxu0 0
          %529 = vmatpush1.bf16.msra.mxu0 0
          %530 = vmatprep.subr.bf16.mxu0 0
          %531 = vmatpush1.bf16.msra.mxu0 0
          %532 = vmatprep.mubr.bf16.mxu0 0
          %533 = vmatmul.mubr.bf16.gmra.mrb[0].mxu0 %v391
          %v534 = vpop.f32.mrb[0].mxu0
          %v535 = vadd.f32 %v493, %v534
          %v536 = vpop.f32.mrb[0].mxu0
          %v537 = vadd.f32 %v497, %v536
          %v538 = vpop.f32.mrb[0].mxu0
          %v539 = vpop.f32.mrb[0].mxu0
          %540 = vdwg.mxu0
          %v543 = vcombine.low %v535, %v537
          %v545 = vunpack.c.l.s4 1966171168
          %v546 = vunpack.c.0.s8 %v545
          %v547 = vlaneseq
          %v548 = vshrl.u32 %v547, 7
          %v549 = vsub.s32 %v546, %v548
          %v550 = vrot.slane %v543, %v549
          %v552 = vunpack.c.l.s4 1966171168
          %v553 = vunpack.c.0.s8 %v552
          %v554 = vlaneseq
          %v555 = vshrl.u32 %v554, 7
          %v556 = vsub.s32 %v553, %v555
          %v557 = vrot.slane %v550, %v556
          %v559 = vlaneseq
          %vm560 = vcmp.ge.s32.totalorder %v559, 0
          %vm561 = vcmp.lt.s32.totalorder %v559, 256
          %vm562 = vmand %vm560, %vm561
          %563 = vst.msk [vmem:[#allocation2] sm:$0x3] %vm562, %v557
        $region72: #{final_layer_forward.1} parent=43 // pred_fallthru
          _
        %v564 = vld [vmem:[#allocation2] sm:$0x3]
        %v565 = vld [vmem:[%s335] sm:$0xff]
        %v566 = vld [vmem:[%s335 + $0x8] sm:$0xff]
        %v567 = vld [vmem:[%s335 + $0x10] sm:$0xff]
        %v568 = vld [vmem:[%s335 + $0x18] sm:$0xff]
        %v569 = vld [vmem:[%s335 + $0x20] sm:$0xff]
        %v570 = vld [vmem:[%s335 + $0x28] sm:$0xff]
        %v571 = vld [vmem:[%s335 + $0x30] sm:$0xff]
        %v572 = vld [vmem:[%s335 + $0x38] sm:$0xff]
        %v573 = vld [vmem:[%s335 + $0x40] sm:$0xff]
        %v574 = vld [vmem:[%s335 + $0x48] sm:$0xff]
        %v575 = vld [vmem:[%s335 + $0x50] sm:$0xff]
        %v576 = vld [vmem:[%s335 + $0x58] sm:$0xff]
        %v577 = vld [vmem:[%s335 + $0x60] sm:$0xff]
        %v578 = vld [vmem:[%s335 + $0x68] sm:$0xff]
        %v579 = vld [vmem:[%s335 + $0x70] sm:$0xff]
        %v580 = vld [vmem:[%s335 + $0x78] sm:$0xff]
        %v581 = vld [vmem:[%s335 + $0x80] sm:$0xff]
        %v582 = vld [vmem:[%s335 + $0x88] sm:$0xff]
        %v583 = vld [vmem:[%s335 + $0x90] sm:$0xff]
        %v584 = vld [vmem:[%s335 + $0x98] sm:$0xff]
        %v585 = vld [vmem:[%s335 + $0xa0] sm:$0xff]
        %v586 = vld [vmem:[%s335 + $0xa8] sm:$0xff]
        %v587 = vld [vmem:[%s335 + $0xb0] sm:$0xff]
        %v588 = vld [vmem:[%s335 + $0xb8] sm:$0xff]
        %v589 = vld [vmem:[%s335 + $0xc0] sm:$0xff]
        %v590 = vld [vmem:[%s335 + $0xc8] sm:$0xff]
        %v591 = vld [vmem:[%s335 + $0xd0] sm:$0xff]
        %v592 = vld [vmem:[%s335 + $0xd8] sm:$0xff]
        %v593 = vld [vmem:[%s335 + $0xe0] sm:$0xff]
        %v594 = vld [vmem:[%s335 + $0xe8] sm:$0xff]
        %v595 = vld [vmem:[%s335 + $0xf0] sm:$0xff]
        %v596 = vld [vmem:[%s335 + $0xf8] sm:$0xff]
        %v597 = vld [vmem:[%s335 + $0x100] sm:$0xff]
        %v598 = vld [vmem:[%s335 + $0x108] sm:$0xff]
        %v599 = vld [vmem:[%s335 + $0x110] sm:$0xff]
        %v600 = vld [vmem:[%s335 + $0x118] sm:$0xff]
        %v601 = vld [vmem:[%s335 + $0x120] sm:$0xff]
        %v602 = vld [vmem:[%s335 + $0x128] sm:$0xff]
        %v603 = vld [vmem:[%s335 + $0x130] sm:$0xff]
        %v604 = vld [vmem:[%s335 + $0x138] sm:$0xff]
        %v605 = vld [vmem:[%s335 + $0x140] sm:$0xff]
        %v606 = vld [vmem:[%s335 + $0x148] sm:$0xff]
        %v607 = vld [vmem:[%s335 + $0x150] sm:$0xff]
        %v608 = vld [vmem:[%s335 + $0x158] sm:$0xff]
        %v609 = vld [vmem:[%s335 + $0x160] sm:$0xff]
        %v610 = vld [vmem:[%s335 + $0x168] sm:$0xff]
        %v611 = vld [vmem:[%s335 + $0x170] sm:$0xff]
        %v612 = vld [vmem:[%s335 + $0x178] sm:$0xff]
        %v613 = vld [vmem:[%s335 + $0x180] sm:$0xff]
        %v614 = vld [vmem:[%s335 + $0x188] sm:$0xff]
        %v615 = vld [vmem:[%s335 + $0x190] sm:$0xff]
        %v616 = vld [vmem:[%s335 + $0x198] sm:$0xff]
        %v617 = vld [vmem:[%s335 + $0x1a0] sm:$0xff]
        %v618 = vld [vmem:[%s335 + $0x1a8] sm:$0xff]
        %v619 = vld [vmem:[%s335 + $0x1b0] sm:$0xff]
        %v620 = vld [vmem:[%s335 + $0x1b8] sm:$0xff]
        %v621 = vld [vmem:[%s335 + $0x1c0] sm:$0xff]
        %v622 = vld [vmem:[%s335 + $0x1c8] sm:$0xff]
        %v623 = vld [vmem:[%s335 + $0x1d0] sm:$0xff]
        %v624 = vld [vmem:[%s335 + $0x1d8] sm:$0xff]
        %v625 = vld [vmem:[%s335 + $0x1e0] sm:$0xff]
        %v626 = vld [vmem:[%s335 + $0x1e8] sm:$0xff]
        %v627 = vld [vmem:[%s335 + $0x1f0] sm:$0xff]
        %v628 = vld [vmem:[%s335 + $0x1f8] sm:$0xff]
        %629 = vadd.xlane.f32.xlu0 %v565
        %v630 = vpop.xlane.xlu0 %629
        %631 = vadd.xlane.f32.xlu0 %v566
        %v632 = vpop.xlane.xlu0 %631
        %633 = vadd.xlane.f32.xlu0 %v567
        %v634 = vpop.xlane.xlu0 %633
        %635 = vadd.xlane.f32.xlu0 %v568
        %v636 = vpop.xlane.xlu0 %635
        %637 = vadd.xlane.f32.xlu0 %v569
        %v638 = vpop.xlane.xlu0 %637
        %639 = vadd.xlane.f32.xlu0 %v570
        %v640 = vpop.xlane.xlu0 %639
        %641 = vadd.xlane.f32.xlu0 %v571
        %v642 = vpop.xlane.xlu0 %641
        %643 = vadd.xlane.f32.xlu0 %v572
        %v644 = vpop.xlane.xlu0 %643
        %645 = vadd.xlane.f32.xlu0 %v573
        %v646 = vpop.xlane.xlu0 %645
        %647 = vadd.xlane.f32.xlu0 %v574
        %v648 = vpop.xlane.xlu0 %647
        %649 = vadd.xlane.f32.xlu0 %v575
        %v650 = vpop.xlane.xlu0 %649
        %651 = vadd.xlane.f32.xlu0 %v576
        %v652 = vpop.xlane.xlu0 %651
        %653 = vadd.xlane.f32.xlu0 %v577
        %v654 = vpop.xlane.xlu0 %653
        %655 = vadd.xlane.f32.xlu0 %v578
        %v656 = vpop.xlane.xlu0 %655
        %657 = vadd.xlane.f32.xlu0 %v579
        %v658 = vpop.xlane.xlu0 %657
        %659 = vadd.xlane.f32.xlu0 %v580
        %v660 = vpop.xlane.xlu0 %659
        %661 = vadd.xlane.f32.xlu0 %v581
        %v662 = vpop.xlane.xlu0 %661
        %663 = vadd.xlane.f32.xlu0 %v582
        %v664 = vpop.xlane.xlu0 %663
        %665 = vadd.xlane.f32.xlu0 %v583
        %v666 = vpop.xlane.xlu0 %665
        %667 = vadd.xlane.f32.xlu0 %v584
        %v668 = vpop.xlane.xlu0 %667
        %669 = vadd.xlane.f32.xlu0 %v585
        %v670 = vpop.xlane.xlu0 %669
        %671 = vadd.xlane.f32.xlu0 %v586
        %v672 = vpop.xlane.xlu0 %671
        %673 = vadd.xlane.f32.xlu0 %v587
        %v674 = vpop.xlane.xlu0 %673
        %675 = vadd.xlane.f32.xlu0 %v588
        %v676 = vpop.xlane.xlu0 %675
        %677 = vadd.xlane.f32.xlu0 %v589
        %v678 = vpop.xlane.xlu0 %677
        %679 = vadd.xlane.f32.xlu0 %v590
        %v680 = vpop.xlane.xlu0 %679
        %681 = vadd.xlane.f32.xlu0 %v591
        %v682 = vpop.xlane.xlu0 %681
        %683 = vadd.xlane.f32.xlu0 %v592
        %v684 = vpop.xlane.xlu0 %683
        %685 = vadd.xlane.f32.xlu0 %v593
        %v686 = vpop.xlane.xlu0 %685
        %687 = vadd.xlane.f32.xlu0 %v594
        %v688 = vpop.xlane.xlu0 %687
        %689 = vadd.xlane.f32.xlu0 %v595
        %v690 = vpop.xlane.xlu0 %689
        %691 = vadd.xlane.f32.xlu0 %v596
        %v692 = vpop.xlane.xlu0 %691
        %693 = vadd.xlane.f32.xlu0 %v597
        %v694 = vpop.xlane.xlu0 %693
        %695 = vadd.xlane.f32.xlu0 %v598
        %v696 = vpop.xlane.xlu0 %695
        %697 = vadd.xlane.f32.xlu0 %v599
        %v698 = vpop.xlane.xlu0 %697
        %699 = vadd.xlane.f32.xlu0 %v600
        %v700 = vpop.xlane.xlu0 %699
        %701 = vadd.xlane.f32.xlu0 %v601
        %v702 = vpop.xlane.xlu0 %701
        %703 = vadd.xlane.f32.xlu0 %v602
        %v704 = vpop.xlane.xlu0 %703
        %705 = vadd.xlane.f32.xlu0 %v603
        %v706 = vpop.xlane.xlu0 %705
        %707 = vadd.xlane.f32.xlu0 %v604
        %v708 = vpop.xlane.xlu0 %707
        %709 = vadd.xlane.f32.xlu0 %v605
        %v710 = vpop.xlane.xlu0 %709
        %711 = vadd.xlane.f32.xlu0 %v606
        %v712 = vpop.xlane.xlu0 %711
        %713 = vadd.xlane.f32.xlu0 %v607
        %v714 = vpop.xlane.xlu0 %713
        %715 = vadd.xlane.f32.xlu0 %v608
        %v716 = vpop.xlane.xlu0 %715
        %717 = vadd.xlane.f32.xlu0 %v609
        %v718 = vpop.xlane.xlu0 %717
        %719 = vadd.xlane.f32.xlu0 %v610
        %v720 = vpop.xlane.xlu0 %719
        %721 = vadd.xlane.f32.xlu0 %v611
        %v722 = vpop.xlane.xlu0 %721
        %723 = vadd.xlane.f32.xlu0 %v612
        %v724 = vpop.xlane.xlu0 %723
        %725 = vadd.xlane.f32.xlu0 %v613
        %v726 = vpop.xlane.xlu0 %725
        %727 = vadd.xlane.f32.xlu0 %v614
        %v728 = vpop.xlane.xlu0 %727
        %729 = vadd.xlane.f32.xlu0 %v615
        %v730 = vpop.xlane.xlu0 %729
        %731 = vadd.xlane.f32.xlu0 %v616
        %v732 = vpop.xlane.xlu0 %731
        %733 = vadd.xlane.f32.xlu0 %v617
        %v734 = vpop.xlane.xlu0 %733
        %735 = vadd.xlane.f32.xlu0 %v618
        %v736 = vpop.xlane.xlu0 %735
        %737 = vadd.xlane.f32.xlu0 %v619
        %v738 = vpop.xlane.xlu0 %737
        %739 = vadd.xlane.f32.xlu0 %v620
        %v740 = vpop.xlane.xlu0 %739
        %741 = vadd.xlane.f32.xlu0 %v621
        %v742 = vpop.xlane.xlu0 %741
        %743 = vadd.xlane.f32.xlu0 %v622
        %v744 = vpop.xlane.xlu0 %743
        %745 = vadd.xlane.f32.xlu0 %v623
        %v746 = vpop.xlane.xlu0 %745
        %747 = vadd.xlane.f32.xlu0 %v624
        %v748 = vpop.xlane.xlu0 %747
        %749 = vadd.xlane.f32.xlu0 %v625
        %v750 = vpop.xlane.xlu0 %749
        %751 = vadd.xlane.f32.xlu0 %v626
        %v752 = vpop.xlane.xlu0 %751
        %753 = vadd.xlane.f32.xlu0 %v627
        %v754 = vpop.xlane.xlu0 %753
        %755 = vadd.xlane.f32.xlu0 %v628
        %v756 = vpop.xlane.xlu0 %755
        %v757 = vrcp.pop 128.0
        %v758 = vmul.f32 %v630, %v757
        %v759 = vmul.f32 %v632, %v757
        %v760 = vmul.f32 %v634, %v757
        %v761 = vmul.f32 %v636, %v757
        %v762 = vmul.f32 %v638, %v757
        %v763 = vmul.f32 %v640, %v757
        %v764 = vmul.f32 %v642, %v757
        %v765 = vmul.f32 %v644, %v757
        %v766 = vmul.f32 %v646, %v757
        %v767 = vmul.f32 %v648, %v757
        %v768 = vmul.f32 %v650, %v757
        %v769 = vmul.f32 %v652, %v757
        %v770 = vmul.f32 %v654, %v757
        %v771 = vmul.f32 %v656, %v757
        %v772 = vmul.f32 %v658, %v757
        %v773 = vmul.f32 %v660, %v757
        %v774 = vmul.f32 %v662, %v757
        %v775 = vmul.f32 %v664, %v757
        %v776 = vmul.f32 %v666, %v757
        %v777 = vmul.f32 %v668, %v757
        %v778 = vmul.f32 %v670, %v757
        %v779 = vmul.f32 %v672, %v757
        %v780 = vmul.f32 %v674, %v757
        %v781 = vmul.f32 %v676, %v757
        %v782 = vmul.f32 %v678, %v757
        %v783 = vmul.f32 %v680, %v757
        %v784 = vmul.f32 %v682, %v757
        %v785 = vmul.f32 %v684, %v757
        %v786 = vmul.f32 %v686, %v757
        %v787 = vmul.f32 %v688, %v757
        %v788 = vmul.f32 %v690, %v757
        %v789 = vmul.f32 %v692, %v757
        %v790 = vmul.f32 %v694, %v757
        %v791 = vmul.f32 %v696, %v757
        %v792 = vmul.f32 %v698, %v757
        %v793 = vmul.f32 %v700, %v757
        %v794 = vmul.f32 %v702, %v757
        %v795 = vmul.f32 %v704, %v757
        %v796 = vmul.f32 %v706, %v757
        %v797 = vmul.f32 %v708, %v757
        %v798 = vmul.f32 %v710, %v757
        %v799 = vmul.f32 %v712, %v757
        %v800 = vmul.f32 %v714, %v757
        %v801 = vmul.f32 %v716, %v757
        %v802 = vmul.f32 %v718, %v757
        %v803 = vmul.f32 %v720, %v757
        %v804 = vmul.f32 %v722, %v757
        %v805 = vmul.f32 %v724, %v757
        %v806 = vmul.f32 %v726, %v757
        %v807 = vmul.f32 %v728, %v757
        %v808 = vmul.f32 %v730, %v757
        %v809 = vmul.f32 %v732, %v757
        %v810 = vmul.f32 %v734, %v757
        %v811 = vmul.f32 %v736, %v757
        %v812 = vmul.f32 %v738, %v757
        %v813 = vmul.f32 %v740, %v757
        %v814 = vmul.f32 %v742, %v757
        %v815 = vmul.f32 %v744, %v757
        %v816 = vmul.f32 %v746, %v757
        %v817 = vmul.f32 %v748, %v757
        %v818 = vmul.f32 %v750, %v757
        %v819 = vmul.f32 %v752, %v757
        %v820 = vmul.f32 %v754, %v757
        %v821 = vmul.f32 %v756, %v757
        %v822 = vsub.f32 %v565, %v758
        %v823 = vsub.f32 %v566, %v759
        %v824 = vsub.f32 %v567, %v760
        %v825 = vsub.f32 %v568, %v761
        %v826 = vsub.f32 %v569, %v762
        %v827 = vsub.f32 %v570, %v763
        %v828 = vsub.f32 %v571, %v764
        %v829 = vsub.f32 %v572, %v765
        %v830 = vsub.f32 %v573, %v766
        %v831 = vsub.f32 %v574, %v767
        %v832 = vsub.f32 %v575, %v768
        %v833 = vsub.f32 %v576, %v769
        %v834 = vsub.f32 %v577, %v770
        %v835 = vsub.f32 %v578, %v771
        %v836 = vsub.f32 %v579, %v772
        %v837 = vsub.f32 %v580, %v773
        %v838 = vsub.f32 %v581, %v774
        %v839 = vsub.f32 %v582, %v775
        %v840 = vsub.f32 %v583, %v776
        %v841 = vsub.f32 %v584, %v777
        %v842 = vsub.f32 %v585, %v778
        %v843 = vsub.f32 %v586, %v779
        %v844 = vsub.f32 %v587, %v780
        %v845 = vsub.f32 %v588, %v781
        %v846 = vsub.f32 %v589, %v782
        %v847 = vsub.f32 %v590, %v783
        %v848 = vsub.f32 %v591, %v784
        %v849 = vsub.f32 %v592, %v785
        %v850 = vsub.f32 %v593, %v786
        %v851 = vsub.f32 %v594, %v787
        %v852 = vsub.f32 %v595, %v788
        %v853 = vsub.f32 %v596, %v789
        %v854 = vsub.f32 %v597, %v790
        %v855 = vsub.f32 %v598, %v791
        %v856 = vsub.f32 %v599, %v792
        %v857 = vsub.f32 %v600, %v793
        %v858 = vsub.f32 %v601, %v794
        %v859 = vsub.f32 %v602, %v795
        %v860 = vsub.f32 %v603, %v796
        %v861 = vsub.f32 %v604, %v797
        %v862 = vsub.f32 %v605, %v798
        %v863 = vsub.f32 %v606, %v799
        %v864 = vsub.f32 %v607, %v800
        %v865 = vsub.f32 %v608, %v801
        %v866 = vsub.f32 %v609, %v802
        %v867 = vsub.f32 %v610, %v803
        %v868 = vsub.f32 %v611, %v804
        %v869 = vsub.f32 %v612, %v805
        %v870 = vsub.f32 %v613, %v806
        %v871 = vsub.f32 %v614, %v807
        %v872 = vsub.f32 %v615, %v808
        %v873 = vsub.f32 %v616, %v809
        %v874 = vsub.f32 %v617, %v810
        %v875 = vsub.f32 %v618, %v811
        %v876 = vsub.f32 %v619, %v812
        %v877 = vsub.f32 %v620, %v813
        %v878 = vsub.f32 %v621, %v814
        %v879 = vsub.f32 %v622, %v815
        %v880 = vsub.f32 %v623, %v816
        %v881 = vsub.f32 %v624, %v817
        %v882 = vsub.f32 %v625, %v818
        %v883 = vsub.f32 %v626, %v819
        %v884 = vsub.f32 %v627, %v820
        %v885 = vsub.f32 %v628, %v821
        %v886 = vmul.f32 %v822, %v822
        %v887 = vmul.f32 %v823, %v823
        %v888 = vmul.f32 %v824, %v824
        %v889 = vmul.f32 %v825, %v825
        %v890 = vmul.f32 %v826, %v826
        %v891 = vmul.f32 %v827, %v827
        %v892 = vmul.f32 %v828, %v828
        %v893 = vmul.f32 %v829, %v829
        %v894 = vmul.f32 %v830, %v830
        %v895 = vmul.f32 %v831, %v831
        %v896 = vmul.f32 %v832, %v832
        %v897 = vmul.f32 %v833, %v833
        %v898 = vmul.f32 %v834, %v834
        %v899 = vmul.f32 %v835, %v835
        %v900 = vmul.f32 %v836, %v836
        %v901 = vmul.f32 %v837, %v837
        %v902 = vmul.f32 %v838, %v838
        %v903 = vmul.f32 %v839, %v839
        %v904 = vmul.f32 %v840, %v840
        %v905 = vmul.f32 %v841, %v841
        %v906 = vmul.f32 %v842, %v842
        %v907 = vmul.f32 %v843, %v843
        %v908 = vmul.f32 %v844, %v844
        %v909 = vmul.f32 %v845, %v845
        %v910 = vmul.f32 %v846, %v846
        %v911 = vmul.f32 %v847, %v847
        %v912 = vmul.f32 %v848, %v848
        %v913 = vmul.f32 %v849, %v849
        %v914 = vmul.f32 %v850, %v850
        %v915 = vmul.f32 %v851, %v851
        %v916 = vmul.f32 %v852, %v852
        %v917 = vmul.f32 %v853, %v853
        %v918 = vmul.f32 %v854, %v854
        %v919 = vmul.f32 %v855, %v855
        %v920 = vmul.f32 %v856, %v856
        %v921 = vmul.f32 %v857, %v857
        %v922 = vmul.f32 %v858, %v858
        %v923 = vmul.f32 %v859, %v859
        %v924 = vmul.f32 %v860, %v860
        %v925 = vmul.f32 %v861, %v861
        %v926 = vmul.f32 %v862, %v862
        %v927 = vmul.f32 %v863, %v863
        %v928 = vmul.f32 %v864, %v864
        %v929 = vmul.f32 %v865, %v865
        %v930 = vmul.f32 %v866, %v866
        %v931 = vmul.f32 %v867, %v867
        %v932 = vmul.f32 %v868, %v868
        %v933 = vmul.f32 %v869, %v869
        %v934 = vmul.f32 %v870, %v870
        %v935 = vmul.f32 %v871, %v871
        %v936 = vmul.f32 %v872, %v872
        %v937 = vmul.f32 %v873, %v873
        %v938 = vmul.f32 %v874, %v874
        %v939 = vmul.f32 %v875, %v875
        %v940 = vmul.f32 %v876, %v876
        %v941 = vmul.f32 %v877, %v877
        %v942 = vmul.f32 %v878, %v878
        %v943 = vmul.f32 %v879, %v879
        %v944 = vmul.f32 %v880, %v880
        %v945 = vmul.f32 %v881, %v881
        %v946 = vmul.f32 %v882, %v882
        %v947 = vmul.f32 %v883, %v883
        %v948 = vmul.f32 %v884, %v884
        %v949 = vmul.f32 %v885, %v885
        %950 = vadd.xlane.f32.xlu0 %v886
        %v951 = vpop.xlane.xlu0 %950
        %952 = vadd.xlane.f32.xlu0 %v887
        %v953 = vpop.xlane.xlu0 %952
        %954 = vadd.xlane.f32.xlu0 %v888
        %v955 = vpop.xlane.xlu0 %954
        %956 = vadd.xlane.f32.xlu0 %v889
        %v957 = vpop.xlane.xlu0 %956
        %958 = vadd.xlane.f32.xlu0 %v890
        %v959 = vpop.xlane.xlu0 %958
        %960 = vadd.xlane.f32.xlu0 %v891
        %v961 = vpop.xlane.xlu0 %960
        %962 = vadd.xlane.f32.xlu0 %v892
        %v963 = vpop.xlane.xlu0 %962
        %964 = vadd.xlane.f32.xlu0 %v893
        %v965 = vpop.xlane.xlu0 %964
        %966 = vadd.xlane.f32.xlu0 %v894
        %v967 = vpop.xlane.xlu0 %966
        %968 = vadd.xlane.f32.xlu0 %v895
        %v969 = vpop.xlane.xlu0 %968
        %970 = vadd.xlane.f32.xlu0 %v896
        %v971 = vpop.xlane.xlu0 %970
        %972 = vadd.xlane.f32.xlu0 %v897
        %v973 = vpop.xlane.xlu0 %972
        %974 = vadd.xlane.f32.xlu0 %v898
        %v975 = vpop.xlane.xlu0 %974
        %976 = vadd.xlane.f32.xlu0 %v899
        %v977 = vpop.xlane.xlu0 %976
        %978 = vadd.xlane.f32.xlu0 %v900
        %v979 = vpop.xlane.xlu0 %978
        %980 = vadd.xlane.f32.xlu0 %v901
        %v981 = vpop.xlane.xlu0 %980
        %982 = vadd.xlane.f32.xlu0 %v902
        %v983 = vpop.xlane.xlu0 %982
        %984 = vadd.xlane.f32.xlu0 %v903
        %v985 = vpop.xlane.xlu0 %984
        %986 = vadd.xlane.f32.xlu0 %v904
        %v987 = vpop.xlane.xlu0 %986
        %988 = vadd.xlane.f32.xlu0 %v905
        %v989 = vpop.xlane.xlu0 %988
        %990 = vadd.xlane.f32.xlu0 %v906
        %v991 = vpop.xlane.xlu0 %990
        %992 = vadd.xlane.f32.xlu0 %v907
        %v993 = vpop.xlane.xlu0 %992
        %994 = vadd.xlane.f32.xlu0 %v908
        %v995 = vpop.xlane.xlu0 %994
        %996 = vadd.xlane.f32.xlu0 %v909
        %v997 = vpop.xlane.xlu0 %996
        %998 = vadd.xlane.f32.xlu0 %v910
        %v999 = vpop.xlane.xlu0 %998
        %1000 = vadd.xlane.f32.xlu0 %v911
        %v1001 = vpop.xlane.xlu0 %1000
        %1002 = vadd.xlane.f32.xlu0 %v912
        %v1003 = vpop.xlane.xlu0 %1002
        %1004 = vadd.xlane.f32.xlu0 %v913
        %v1005 = vpop.xlane.xlu0 %1004
        %1006 = vadd.xlane.f32.xlu0 %v914
        %v1007 = vpop.xlane.xlu0 %1006
        %1008 = vadd.xlane.f32.xlu0 %v915
        %v1009 = vpop.xlane.xlu0 %1008
        %1010 = vadd.xlane.f32.xlu0 %v916
        %v1011 = vpop.xlane.xlu0 %1010
        %1012 = vadd.xlane.f32.xlu0 %v917
        %v1013 = vpop.xlane.xlu0 %1012
        %1014 = vadd.xlane.f32.xlu0 %v918
        %v1015 = vpop.xlane.xlu0 %1014
        %1016 = vadd.xlane.f32.xlu0 %v919
        %v1017 = vpop.xlane.xlu0 %1016
        %1018 = vadd.xlane.f32.xlu0 %v920
        %v1019 = vpop.xlane.xlu0 %1018
        %1020 = vadd.xlane.f32.xlu0 %v921
        %v1021 = vpop.xlane.xlu0 %1020
        %1022 = vadd.xlane.f32.xlu0 %v922
        %v1023 = vpop.xlane.xlu0 %1022
        %1024 = vadd.xlane.f32.xlu0 %v923
        %v1025 = vpop.xlane.xlu0 %1024
        %1026 = vadd.xlane.f32.xlu0 %v924
        %v1027 = vpop.xlane.xlu0 %1026
        %1028 = vadd.xlane.f32.xlu0 %v925
        %v1029 = vpop.xlane.xlu0 %1028
        %1030 = vadd.xlane.f32.xlu0 %v926
        %v1031 = vpop.xlane.xlu0 %1030
        %1032 = vadd.xlane.f32.xlu0 %v927
        %v1033 = vpop.xlane.xlu0 %1032
        %1034 = vadd.xlane.f32.xlu0 %v928
        %v1035 = vpop.xlane.xlu0 %1034
        %1036 = vadd.xlane.f32.xlu0 %v929
        %v1037 = vpop.xlane.xlu0 %1036
        %1038 = vadd.xlane.f32.xlu0 %v930
        %v1039 = vpop.xlane.xlu0 %1038
        %1040 = vadd.xlane.f32.xlu0 %v931
        %v1041 = vpop.xlane.xlu0 %1040
        %1042 = vadd.xlane.f32.xlu0 %v932
        %v1043 = vpop.xlane.xlu0 %1042
        %1044 = vadd.xlane.f32.xlu0 %v933
        %v1045 = vpop.xlane.xlu0 %1044
        %1046 = vadd.xlane.f32.xlu0 %v934
        %v1047 = vpop.xlane.xlu0 %1046
        %1048 = vadd.xlane.f32.xlu0 %v935
        %v1049 = vpop.xlane.xlu0 %1048
        %1050 = vadd.xlane.f32.xlu0 %v936
        %v1051 = vpop.xlane.xlu0 %1050
        %1052 = vadd.xlane.f32.xlu0 %v937
        %v1053 = vpop.xlane.xlu0 %1052
        %1054 = vadd.xlane.f32.xlu0 %v938
        %v1055 = vpop.xlane.xlu0 %1054
        %1056 = vadd.xlane.f32.xlu0 %v939
        %v1057 = vpop.xlane.xlu0 %1056
        %1058 = vadd.xlane.f32.xlu0 %v940
        %v1059 = vpop.xlane.xlu0 %1058
        %1060 = vadd.xlane.f32.xlu0 %v941
        %v1061 = vpop.xlane.xlu0 %1060
        %1062 = vadd.xlane.f32.xlu0 %v942
        %v1063 = vpop.xlane.xlu0 %1062
        %1064 = vadd.xlane.f32.xlu0 %v943
        %v1065 = vpop.xlane.xlu0 %1064
        %1066 = vadd.xlane.f32.xlu0 %v944
        %v1067 = vpop.xlane.xlu0 %1066
        %1068 = vadd.xlane.f32.xlu0 %v945
        %v1069 = vpop.xlane.xlu0 %1068
        %1070 = vadd.xlane.f32.xlu0 %v946
        %v1071 = vpop.xlane.xlu0 %1070
        %1072 = vadd.xlane.f32.xlu0 %v947
        %v1073 = vpop.xlane.xlu0 %1072
        %1074 = vadd.xlane.f32.xlu0 %v948
        %v1075 = vpop.xlane.xlu0 %1074
        %1076 = vadd.xlane.f32.xlu0 %v949
        %v1077 = vpop.xlane.xlu0 %1076
        %v1078 = vmul.f32 %v951, %v757
        %v1079 = vmul.f32 %v953, %v757
        %v1080 = vmul.f32 %v955, %v757
        %v1081 = vmul.f32 %v957, %v757
        %v1082 = vmul.f32 %v959, %v757
        %v1083 = vmul.f32 %v961, %v757
        %v1084 = vmul.f32 %v963, %v757
        %v1085 = vmul.f32 %v965, %v757
        %v1086 = vmul.f32 %v967, %v757
        %v1087 = vmul.f32 %v969, %v757
        %v1088 = vmul.f32 %v971, %v757
        %v1089 = vmul.f32 %v973, %v757
        %v1090 = vmul.f32 %v975, %v757
        %v1091 = vmul.f32 %v977, %v757
        %v1092 = vmul.f32 %v979, %v757
        %v1093 = vmul.f32 %v981, %v757
        %v1094 = vmul.f32 %v983, %v757
        %v1095 = vmul.f32 %v985, %v757
        %v1096 = vmul.f32 %v987, %v757
        %v1097 = vmul.f32 %v989, %v757
        %v1098 = vmul.f32 %v991, %v757
        %v1099 = vmul.f32 %v993, %v757
        %v1100 = vmul.f32 %v995, %v757
        %v1101 = vmul.f32 %v997, %v757
        %v1102 = vmul.f32 %v999, %v757
        %v1103 = vmul.f32 %v1001, %v757
        %v1104 = vmul.f32 %v1003, %v757
        %v1105 = vmul.f32 %v1005, %v757
        %v1106 = vmul.f32 %v1007, %v757
        %v1107 = vmul.f32 %v1009, %v757
        %v1108 = vmul.f32 %v1011, %v757
        %v1109 = vmul.f32 %v1013, %v757
        %v1110 = vmul.f32 %v1015, %v757
        %v1111 = vmul.f32 %v1017, %v757
        %v1112 = vmul.f32 %v1019, %v757
        %v1113 = vmul.f32 %v1021, %v757
        %v1114 = vmul.f32 %v1023, %v757
        %v1115 = vmul.f32 %v1025, %v757
        %v1116 = vmul.f32 %v1027, %v757
        %v1117 = vmul.f32 %v1029, %v757
        %v1118 = vmul.f32 %v1031, %v757
        %v1119 = vmul.f32 %v1033, %v757
        %v1120 = vmul.f32 %v1035, %v757
        %v1121 = vmul.f32 %v1037, %v757
        %v1122 = vmul.f32 %v1039, %v757
        %v1123 = vmul.f32 %v1041, %v757
        %v1124 = vmul.f32 %v1043, %v757
        %v1125 = vmul.f32 %v1045, %v757
        %v1126 = vmul.f32 %v1047, %v757
        %v1127 = vmul.f32 %v1049, %v757
        %v1128 = vmul.f32 %v1051, %v757
        %v1129 = vmul.f32 %v1053, %v757
        %v1130 = vmul.f32 %v1055, %v757
        %v1131 = vmul.f32 %v1057, %v757
        %v1132 = vmul.f32 %v1059, %v757
        %v1133 = vmul.f32 %v1061, %v757
        %v1134 = vmul.f32 %v1063, %v757
        %v1135 = vmul.f32 %v1065, %v757
        %v1136 = vmul.f32 %v1067, %v757
        %v1137 = vmul.f32 %v1069, %v757
        %v1138 = vmul.f32 %v1071, %v757
        %v1139 = vmul.f32 %v1073, %v757
        %v1140 = vmul.f32 %v1075, %v757
        %v1141 = vmul.f32 %v1077, %v757
        %v1142 = vadd.f32 %v1078, 1e-06
        %v1143 = vadd.f32 %v1079, 1e-06
        %v1144 = vadd.f32 %v1080, 1e-06
        %v1145 = vadd.f32 %v1081, 1e-06
        %v1146 = vadd.f32 %v1082, 1e-06
        %v1147 = vadd.f32 %v1083, 1e-06
        %v1148 = vadd.f32 %v1084, 1e-06
        %v1149 = vadd.f32 %v1085, 1e-06
        %v1150 = vadd.f32 %v1086, 1e-06
        %v1151 = vadd.f32 %v1087, 1e-06
        %v1152 = vadd.f32 %v1088, 1e-06
        %v1153 = vadd.f32 %v1089, 1e-06
        %v1154 = vadd.f32 %v1090, 1e-06
        %v1155 = vadd.f32 %v1091, 1e-06
        %v1156 = vadd.f32 %v1092, 1e-06
        %v1157 = vadd.f32 %v1093, 1e-06
        %v1158 = vadd.f32 %v1094, 1e-06
        %v1159 = vadd.f32 %v1095, 1e-06
        %v1160 = vadd.f32 %v1096, 1e-06
        %v1161 = vadd.f32 %v1097, 1e-06
        %v1162 = vadd.f32 %v1098, 1e-06
        %v1163 = vadd.f32 %v1099, 1e-06
        %v1164 = vadd.f32 %v1100, 1e-06
        %v1165 = vadd.f32 %v1101, 1e-06
        %v1166 = vadd.f32 %v1102, 1e-06
        %v1167 = vadd.f32 %v1103, 1e-06
        %v1168 = vadd.f32 %v1104, 1e-06
        %v1169 = vadd.f32 %v1105, 1e-06
        %v1170 = vadd.f32 %v1106, 1e-06
        %v1171 = vadd.f32 %v1107, 1e-06
        %v1172 = vadd.f32 %v1108, 1e-06
        %v1173 = vadd.f32 %v1109, 1e-06
        %v1174 = vadd.f32 %v1110, 1e-06
        %v1175 = vadd.f32 %v1111, 1e-06
        %v1176 = vadd.f32 %v1112, 1e-06
        %v1177 = vadd.f32 %v1113, 1e-06
        %v1178 = vadd.f32 %v1114, 1e-06
        %v1179 = vadd.f32 %v1115, 1e-06
        %v1180 = vadd.f32 %v1116, 1e-06
        %v1181 = vadd.f32 %v1117, 1e-06
        %v1182 = vadd.f32 %v1118, 1e-06
        %v1183 = vadd.f32 %v1119, 1e-06
        %v1184 = vadd.f32 %v1120, 1e-06
        %v1185 = vadd.f32 %v1121, 1e-06
        %v1186 = vadd.f32 %v1122, 1e-06
        %v1187 = vadd.f32 %v1123, 1e-06
        %v1188 = vadd.f32 %v1124, 1e-06
        %v1189 = vadd.f32 %v1125, 1e-06
        %v1190 = vadd.f32 %v1126, 1e-06
        %v1191 = vadd.f32 %v1127, 1e-06
        %v1192 = vadd.f32 %v1128, 1e-06
        %v1193 = vadd.f32 %v1129, 1e-06
        %v1194 = vadd.f32 %v1130, 1e-06
        %v1195 = vadd.f32 %v1131, 1e-06
        %v1196 = vadd.f32 %v1132, 1e-06
        %v1197 = vadd.f32 %v1133, 1e-06
        %v1198 = vadd.f32 %v1134, 1e-06
        %v1199 = vadd.f32 %v1135, 1e-06
        %v1200 = vadd.f32 %v1136, 1e-06
        %v1201 = vadd.f32 %v1137, 1e-06
        %v1202 = vadd.f32 %v1138, 1e-06
        %v1203 = vadd.f32 %v1139, 1e-06
        %v1204 = vadd.f32 %v1140, 1e-06
        %v1205 = vadd.f32 %v1141, 1e-06
        %v1206 = vrsqrt.pop %v1142
        %v1207 = vrsqrt.pop %v1143
        %v1208 = vrsqrt.pop %v1144
        %v1209 = vrsqrt.pop %v1145
        %v1210 = vrsqrt.pop %v1146
        %v1211 = vrsqrt.pop %v1147
        %v1212 = vrsqrt.pop %v1148
        %v1213 = vrsqrt.pop %v1149
        %v1214 = vrsqrt.pop %v1150
        %v1215 = vrsqrt.pop %v1151
        %v1216 = vrsqrt.pop %v1152
        %v1217 = vrsqrt.pop %v1153
        %v1218 = vrsqrt.pop %v1154
        %v1219 = vrsqrt.pop %v1155
        %v1220 = vrsqrt.pop %v1156
        %v1221 = vrsqrt.pop %v1157
        %v1222 = vrsqrt.pop %v1158
        %v1223 = vrsqrt.pop %v1159
        %v1224 = vrsqrt.pop %v1160
        %v1225 = vrsqrt.pop %v1161
        %v1226 = vrsqrt.pop %v1162
        %v1227 = vrsqrt.pop %v1163
        %v1228 = vrsqrt.pop %v1164
        %v1229 = vrsqrt.pop %v1165
        %v1230 = vrsqrt.pop %v1166
        %v1231 = vrsqrt.pop %v1167
        %v1232 = vrsqrt.pop %v1168
        %v1233 = vrsqrt.pop %v1169
        %v1234 = vrsqrt.pop %v1170
        %v1235 = vrsqrt.pop %v1171
        %v1236 = vrsqrt.pop %v1172
        %v1237 = vrsqrt.pop %v1173
        %v1238 = vrsqrt.pop %v1174
        %v1239 = vrsqrt.pop %v1175
        %v1240 = vrsqrt.pop %v1176
        %v1241 = vrsqrt.pop %v1177
        %v1242 = vrsqrt.pop %v1178
        %v1243 = vrsqrt.pop %v1179
        %v1244 = vrsqrt.pop %v1180
        %v1245 = vrsqrt.pop %v1181
        %v1246 = vrsqrt.pop %v1182
        %v1247 = vrsqrt.pop %v1183
        %v1248 = vrsqrt.pop %v1184
        %v1249 = vrsqrt.pop %v1185
        %v1250 = vrsqrt.pop %v1186
        %v1251 = vrsqrt.pop %v1187
        %v1252 = vrsqrt.pop %v1188
        %v1253 = vrsqrt.pop %v1189
        %v1254 = vrsqrt.pop %v1190
        %v1255 = vrsqrt.pop %v1191
        %v1256 = vrsqrt.pop %v1192
        %v1257 = vrsqrt.pop %v1193
        %v1258 = vrsqrt.pop %v1194
        %v1259 = vrsqrt.pop %v1195
        %v1260 = vrsqrt.pop %v1196
        %v1261 = vrsqrt.pop %v1197
        %v1262 = vrsqrt.pop %v1198
        %v1263 = vrsqrt.pop %v1199
        %v1264 = vrsqrt.pop %v1200
        %v1265 = vrsqrt.pop %v1201
        %v1266 = vrsqrt.pop %v1202
        %v1267 = vrsqrt.pop %v1203
        %v1268 = vrsqrt.pop %v1204
        %v1269 = vrsqrt.pop %v1205
        %v1270 = vmul.f32 %v822, %v1206
        %v1271 = vmul.f32 %v823, %v1207
        %v1272 = vmul.f32 %v824, %v1208
        %v1273 = vmul.f32 %v825, %v1209
        %v1274 = vmul.f32 %v826, %v1210
        %v1275 = vmul.f32 %v827, %v1211
        %v1276 = vmul.f32 %v828, %v1212
        %v1277 = vmul.f32 %v829, %v1213
        %v1278 = vmul.f32 %v830, %v1214
        %v1279 = vmul.f32 %v831, %v1215
        %v1280 = vmul.f32 %v832, %v1216
        %v1281 = vmul.f32 %v833, %v1217
        %v1282 = vmul.f32 %v834, %v1218
        %v1283 = vmul.f32 %v835, %v1219
        %v1284 = vmul.f32 %v836, %v1220
        %v1285 = vmul.f32 %v837, %v1221
        %v1286 = vmul.f32 %v838, %v1222
        %v1287 = vmul.f32 %v839, %v1223
        %v1288 = vmul.f32 %v840, %v1224
        %v1289 = vmul.f32 %v841, %v1225
        %v1290 = vmul.f32 %v842, %v1226
        %v1291 = vmul.f32 %v843, %v1227
        %v1292 = vmul.f32 %v844, %v1228
        %v1293 = vmul.f32 %v845, %v1229
        %v1294 = vmul.f32 %v846, %v1230
        %v1295 = vmul.f32 %v847, %v1231
        %v1296 = vmul.f32 %v848, %v1232
        %v1297 = vmul.f32 %v849, %v1233
        %v1298 = vmul.f32 %v850, %v1234
        %v1299 = vmul.f32 %v851, %v1235
        %v1300 = vmul.f32 %v852, %v1236
        %v1301 = vmul.f32 %v853, %v1237
        %v1302 = vmul.f32 %v854, %v1238
        %v1303 = vmul.f32 %v855, %v1239
        %v1304 = vmul.f32 %v856, %v1240
        %v1305 = vmul.f32 %v857, %v1241
        %v1306 = vmul.f32 %v858, %v1242
        %v1307 = vmul.f32 %v859, %v1243
        %v1308 = vmul.f32 %v860, %v1244
        %v1309 = vmul.f32 %v861, %v1245
        %v1310 = vmul.f32 %v862, %v1246
        %v1311 = vmul.f32 %v863, %v1247
        %v1312 = vmul.f32 %v864, %v1248
        %v1313 = vmul.f32 %v865, %v1249
        %v1314 = vmul.f32 %v866, %v1250
        %v1315 = vmul.f32 %v867, %v1251
        %v1316 = vmul.f32 %v868, %v1252
        %v1317 = vmul.f32 %v869, %v1253
        %v1318 = vmul.f32 %v870, %v1254
        %v1319 = vmul.f32 %v871, %v1255
        %v1320 = vmul.f32 %v872, %v1256
        %v1321 = vmul.f32 %v873, %v1257
        %v1322 = vmul.f32 %v874, %v1258
        %v1323 = vmul.f32 %v875, %v1259
        %v1324 = vmul.f32 %v876, %v1260
        %v1325 = vmul.f32 %v877, %v1261
        %v1326 = vmul.f32 %v878, %v1262
        %v1327 = vmul.f32 %v879, %v1263
        %v1328 = vmul.f32 %v880, %v1264
        %v1329 = vmul.f32 %v881, %v1265
        %v1330 = vmul.f32 %v882, %v1266
        %v1331 = vmul.f32 %v883, %v1267
        %v1332 = vmul.f32 %v884, %v1268
        %v1333 = vmul.f32 %v885, %v1269
        %v1335 = vrot.slane %v564, 1
        %v1337 = vadd.f32 %v1335, 1.0
        %v1339 = vlaneseq
        %v1340 = vshrl.u32 %v1339, 7
        %v1341 = vsub.s32 0, %v1340
        %v1342 = vrot.slane %v1337, %v1341
        %v1344 = vmul.f32 %v1270, %v1342
        %v1345 = vmul.f32 %v1271, %v1342
        %v1346 = vmul.f32 %v1272, %v1342
        %v1347 = vmul.f32 %v1273, %v1342
        %v1348 = vmul.f32 %v1274, %v1342
        %v1349 = vmul.f32 %v1275, %v1342
        %v1350 = vmul.f32 %v1276, %v1342
        %v1351 = vmul.f32 %v1277, %v1342
        %v1352 = vmul.f32 %v1278, %v1342
        %v1353 = vmul.f32 %v1279, %v1342
        %v1354 = vmul.f32 %v1280, %v1342
        %v1355 = vmul.f32 %v1281, %v1342
        %v1356 = vmul.f32 %v1282, %v1342
        %v1357 = vmul.f32 %v1283, %v1342
        %v1358 = vmul.f32 %v1284, %v1342
        %v1359 = vmul.f32 %v1285, %v1342
        %v1360 = vmul.f32 %v1286, %v1342
        %v1361 = vmul.f32 %v1287, %v1342
        %v1362 = vmul.f32 %v1288, %v1342
        %v1363 = vmul.f32 %v1289, %v1342
        %v1364 = vmul.f32 %v1290, %v1342
        %v1365 = vmul.f32 %v1291, %v1342
        %v1366 = vmul.f32 %v1292, %v1342
        %v1367 = vmul.f32 %v1293, %v1342
        %v1368 = vmul.f32 %v1294, %v1342
        %v1369 = vmul.f32 %v1295, %v1342
        %v1370 = vmul.f32 %v1296, %v1342
        %v1371 = vmul.f32 %v1297, %v1342
        %v1372 = vmul.f32 %v1298, %v1342
        %v1373 = vmul.f32 %v1299, %v1342
        %v1374 = vmul.f32 %v1300, %v1342
        %v1375 = vmul.f32 %v1301, %v1342
        %v1376 = vmul.f32 %v1302, %v1342
        %v1377 = vmul.f32 %v1303, %v1342
        %v1378 = vmul.f32 %v1304, %v1342
        %v1379 = vmul.f32 %v1305, %v1342
        %v1380 = vmul.f32 %v1306, %v1342
        %v1381 = vmul.f32 %v1307, %v1342
        %v1382 = vmul.f32 %v1308, %v1342
        %v1383 = vmul.f32 %v1309, %v1342
        %v1384 = vmul.f32 %v1310, %v1342
        %v1385 = vmul.f32 %v1311, %v1342
        %v1386 = vmul.f32 %v1312, %v1342
        %v1387 = vmul.f32 %v1313, %v1342
        %v1388 = vmul.f32 %v1314, %v1342
        %v1389 = vmul.f32 %v1315, %v1342
        %v1390 = vmul.f32 %v1316, %v1342
        %v1391 = vmul.f32 %v1317, %v1342
        %v1392 = vmul.f32 %v1318, %v1342
        %v1393 = vmul.f32 %v1319, %v1342
        %v1394 = vmul.f32 %v1320, %v1342
        %v1395 = vmul.f32 %v1321, %v1342
        %v1396 = vmul.f32 %v1322, %v1342
        %v1397 = vmul.f32 %v1323, %v1342
        %v1398 = vmul.f32 %v1324, %v1342
        %v1399 = vmul.f32 %v1325, %v1342
        %v1400 = vmul.f32 %v1326, %v1342
        %v1401 = vmul.f32 %v1327, %v1342
        %v1402 = vmul.f32 %v1328, %v1342
        %v1403 = vmul.f32 %v1329, %v1342
        %v1404 = vmul.f32 %v1330, %v1342
        %v1405 = vmul.f32 %v1331, %v1342
        %v1406 = vmul.f32 %v1332, %v1342
        %v1407 = vmul.f32 %v1333, %v1342
        %v1408 = vlaneseq
        %v1409 = vshrl.u32 %v1408, 7
        %v1410 = vsub.s32 0, %v1409
        %v1411 = vrot.slane %v564, %v1410
        %v1413 = vadd.f32 %v1344, %v1411
        %v1414 = vadd.f32 %v1345, %v1411
        %v1415 = vadd.f32 %v1346, %v1411
        %v1416 = vadd.f32 %v1347, %v1411
        %v1417 = vadd.f32 %v1348, %v1411
        %v1418 = vadd.f32 %v1349, %v1411
        %v1419 = vadd.f32 %v1350, %v1411
        %v1420 = vadd.f32 %v1351, %v1411
        %v1421 = vadd.f32 %v1352, %v1411
        %v1422 = vadd.f32 %v1353, %v1411
        %v1423 = vadd.f32 %v1354, %v1411
        %v1424 = vadd.f32 %v1355, %v1411
        %v1425 = vadd.f32 %v1356, %v1411
        %v1426 = vadd.f32 %v1357, %v1411
        %v1427 = vadd.f32 %v1358, %v1411
        %v1428 = vadd.f32 %v1359, %v1411
        %v1429 = vadd.f32 %v1360, %v1411
        %v1430 = vadd.f32 %v1361, %v1411
        %v1431 = vadd.f32 %v1362, %v1411
        %v1432 = vadd.f32 %v1363, %v1411
        %v1433 = vadd.f32 %v1364, %v1411
        %v1434 = vadd.f32 %v1365, %v1411
        %v1435 = vadd.f32 %v1366, %v1411
        %v1436 = vadd.f32 %v1367, %v1411
        %v1437 = vadd.f32 %v1368, %v1411
        %v1438 = vadd.f32 %v1369, %v1411
        %v1439 = vadd.f32 %v1370, %v1411
        %v1440 = vadd.f32 %v1371, %v1411
        %v1441 = vadd.f32 %v1372, %v1411
        %v1442 = vadd.f32 %v1373, %v1411
        %v1443 = vadd.f32 %v1374, %v1411
        %v1444 = vadd.f32 %v1375, %v1411
        %v1445 = vadd.f32 %v1376, %v1411
        %v1446 = vadd.f32 %v1377, %v1411
        %v1447 = vadd.f32 %v1378, %v1411
        %v1448 = vadd.f32 %v1379, %v1411
        %v1449 = vadd.f32 %v1380, %v1411
        %v1450 = vadd.f32 %v1381, %v1411
        %v1451 = vadd.f32 %v1382, %v1411
        %v1452 = vadd.f32 %v1383, %v1411
        %v1453 = vadd.f32 %v1384, %v1411
        %v1454 = vadd.f32 %v1385, %v1411
        %v1455 = vadd.f32 %v1386, %v1411
        %v1456 = vadd.f32 %v1387, %v1411
        %v1457 = vadd.f32 %v1388, %v1411
        %v1458 = vadd.f32 %v1389, %v1411
        %v1459 = vadd.f32 %v1390, %v1411
        %v1460 = vadd.f32 %v1391, %v1411
        %v1461 = vadd.f32 %v1392, %v1411
        %v1462 = vadd.f32 %v1393, %v1411
        %v1463 = vadd.f32 %v1394, %v1411
        %v1464 = vadd.f32 %v1395, %v1411
        %v1465 = vadd.f32 %v1396, %v1411
        %v1466 = vadd.f32 %v1397, %v1411
        %v1467 = vadd.f32 %v1398, %v1411
        %v1468 = vadd.f32 %v1399, %v1411
        %v1469 = vadd.f32 %v1400, %v1411
        %v1470 = vadd.f32 %v1401, %v1411
        %v1471 = vadd.f32 %v1402, %v1411
        %v1472 = vadd.f32 %v1403, %v1411
        %v1473 = vadd.f32 %v1404, %v1411
        %v1474 = vadd.f32 %v1405, %v1411
        %v1475 = vadd.f32 %v1406, %v1411
        %v1476 = vadd.f32 %v1407, %v1411
        %v1477 = vpack.c.bf16 %v1414, %v1413
        %v1478 = vpack.c.bf16 %v1416, %v1415
        %v1479 = vpack.c.bf16 %v1418, %v1417
        %v1480 = vpack.c.bf16 %v1420, %v1419
        %v1481 = vpack.c.bf16 %v1422, %v1421
        %v1482 = vpack.c.bf16 %v1424, %v1423
        %v1483 = vpack.c.bf16 %v1426, %v1425
        %v1484 = vpack.c.bf16 %v1428, %v1427
        %v1485 = vpack.c.bf16 %v1430, %v1429
        %v1486 = vpack.c.bf16 %v1432, %v1431
        %v1487 = vpack.c.bf16 %v1434, %v1433
        %v1488 = vpack.c.bf16 %v1436, %v1435
        %v1489 = vpack.c.bf16 %v1438, %v1437
        %v1490 = vpack.c.bf16 %v1440, %v1439
        %v1491 = vpack.c.bf16 %v1442, %v1441
        %v1492 = vpack.c.bf16 %v1444, %v1443
        %v1493 = vpack.c.bf16 %v1446, %v1445
        %v1494 = vpack.c.bf16 %v1448, %v1447
        %v1495 = vpack.c.bf16 %v1450, %v1449
        %v1496 = vpack.c.bf16 %v1452, %v1451
        %v1497 = vpack.c.bf16 %v1454, %v1453
        %v1498 = vpack.c.bf16 %v1456, %v1455
        %v1499 = vpack.c.bf16 %v1458, %v1457
        %v1500 = vpack.c.bf16 %v1460, %v1459
        %v1501 = vpack.c.bf16 %v1462, %v1461
        %v1502 = vpack.c.bf16 %v1464, %v1463
        %v1503 = vpack.c.bf16 %v1466, %v1465
        %v1504 = vpack.c.bf16 %v1468, %v1467
        %v1505 = vpack.c.bf16 %v1470, %v1469
        %v1506 = vpack.c.bf16 %v1472, %v1471
        %v1507 = vpack.c.bf16 %v1474, %v1473
        %v1508 = vpack.c.bf16 %v1476, %v1475
        %v1509 = vld [vmem:[#allocation11] sm:$0xf]
        %v1510 = vld [vmem:[#allocation11 + $0x4] sm:$0xf]
        %v1511 = vld [vmem:[#allocation11 + $0x8] sm:$0xf]
        %v1512 = vld [vmem:[#allocation11 + $0xc] sm:$0xf]
        %v1513 = vld [vmem:[#allocation11 + $0x10] sm:$0xf]
        %v1514 = vld [vmem:[#allocation11 + $0x14] sm:$0xf]
        %v1515 = vld [vmem:[#allocation11 + $0x18] sm:$0xf]
        %v1516 = vld [vmem:[#allocation11 + $0x1c] sm:$0xf]
        %v1517 = vld [vmem:[#allocation11 + $0x20] sm:$0xf]
        %v1518 = vld [vmem:[#allocation11 + $0x24] sm:$0xf]
        %v1519 = vld [vmem:[#allocation11 + $0x28] sm:$0xf]
        %v1520 = vld [vmem:[#allocation11 + $0x2c] sm:$0xf]
        %v1521 = vld [vmem:[#allocation11 + $0x30] sm:$0xf]
        %v1522 = vld [vmem:[#allocation11 + $0x34] sm:$0xf]
        %v1523 = vld [vmem:[#allocation11 + $0x38] sm:$0xf]
        %v1524 = vld [vmem:[#allocation11 + $0x3c] sm:$0xf]
        %v1525 = vld [vmem:[#allocation12] sm:$0x1]
        %v1527 = vlaneseq
        %v1528 = vshrl.u32 %v1527, 7
        %v1529 = vsub.s32 0, %v1528
        %v1530 = vrot.slane %v1525, %v1529
        %v1548 = vunpack.c.l.b16 %v1509
        %v1549 = vunpack.c.l.b16 %v1510
        %v1550 = vunpack.c.l.b16 %v1511
        %v1551 = vunpack.c.l.b16 %v1512
        %v1552 = vunpack.c.l.b16 %v1513
        %v1553 = vunpack.c.l.b16 %v1514
        %v1554 = vunpack.c.l.b16 %v1515
        %v1555 = vunpack.c.l.b16 %v1516
        %v1556 = vunpack.c.l.b16 %v1517
        %v1557 = vunpack.c.l.b16 %v1518
        %v1558 = vunpack.c.l.b16 %v1519
        %v1559 = vunpack.c.l.b16 %v1520
        %v1560 = vunpack.c.l.b16 %v1521
        %v1561 = vunpack.c.l.b16 %v1522
        %v1562 = vunpack.c.l.b16 %v1523
        %v1563 = vunpack.c.l.b16 %v1524
        %v1564 = vpack.c.b16 %v1549, %v1548
        %v1565 = vpack.c.b16 %v1551, %v1550
        %v1566 = vpack.c.b16 %v1553, %v1552
        %v1567 = vpack.c.b16 %v1555, %v1554
        %v1568 = vpack.c.b16 %v1557, %v1556
        %v1569 = vpack.c.b16 %v1559, %v1558
        %v1570 = vpack.c.b16 %v1561, %v1560
        %v1571 = vpack.c.b16 %v1563, %v1562
        %1580 = vmatprep.subr.bf16.mxu0 0
        %1581 = vmatpush1.bf16.msra.mxu0 %v1564
        %1582 = vmatprep.subr.bf16.mxu0 0
        %1583 = vmatpush1.bf16.msra.mxu0 %v1565
        %1584 = vmatprep.subr.bf16.mxu0 0
        %1585 = vmatpush1.bf16.msra.mxu0 %v1566
        %1586 = vmatprep.subr.bf16.mxu0 0
        %1587 = vmatpush1.bf16.msra.mxu0 %v1567
        %1588 = vmatprep.subr.bf16.mxu0 0
        %1589 = vmatpush1.bf16.msra.mxu0 %v1568
        %1590 = vmatprep.subr.bf16.mxu0 0
        %1591 = vmatpush1.bf16.msra.mxu0 %v1569
        %1592 = vmatprep.subr.bf16.mxu0 0
        %1593 = vmatpush1.bf16.msra.mxu0 %v1570
        %1594 = vmatprep.subr.bf16.mxu0 0
        %1595 = vmatpush1.bf16.msra.mxu0 %v1571
        %1596 = vmatprep.subr.bf16.mxu0 0
        %1597 = vmatpush1.bf16.msra.mxu0 0
        %1598 = vmatprep.subr.bf16.mxu0 0
        %1599 = vmatpush1.bf16.msra.mxu0 0
        %1600 = vmatprep.subr.bf16.mxu0 0
        %1601 = vmatpush1.bf16.msra.mxu0 0
        %1602 = vmatprep.subr.bf16.mxu0 0
        %1603 = vmatpush1.bf16.msra.mxu0 0
        %1604 = vmatprep.subr.bf16.mxu0 0
        %1605 = vmatpush1.bf16.msra.mxu0 0
        %1606 = vmatprep.subr.bf16.mxu0 0
        %1607 = vmatpush1.bf16.msra.mxu0 0
        %1608 = vmatprep.subr.bf16.mxu0 0
        %1609 = vmatpush1.bf16.msra.mxu0 0
        %1610 = vmatprep.subr.bf16.mxu0 0
        %1611 = vmatpush1.bf16.msra.mxu0 0
        %1612 = vmatprep.mubr.bf16.mxu0 0
        %1613 = vmatmul.mubr.bf16.gmra.mrb[0].mxu0 %v1477
        %v1614 = vpop.f32.mrb[0].mxu0
        %v1615 = vadd.f32 %v1530, %v1614
        %v1616 = vpop.f32.mrb[0].mxu0
        %v1617 = vpop.f32.mrb[0].mxu0
        %v1618 = vadd.f32 %v1530, %v1617
        %v1619 = vpop.f32.mrb[0].mxu0
        %1620 = vmatprep.mubr.bf16.mxu0 0
        %1621 = vmatmul.mubr.bf16.gmra.mrb[0].mxu0 %v1478
        %v1622 = vpop.f32.mrb[0].mxu0
        %v1623 = vadd.f32 %v1530, %v1622
        %v1624 = vpop.f32.mrb[0].mxu0
        %v1625 = vpop.f32.mrb[0].mxu0
        %v1626 = vadd.f32 %v1530, %v1625
        %v1627 = vpop.f32.mrb[0].mxu0
        %1628 = vmatprep.mubr.bf16.mxu0 0
        %1629 = vmatmul.mubr.bf16.gmra.mrb[0].mxu0 %v1479
        %v1630 = vpop.f32.mrb[0].mxu0
        %v1631 = vadd.f32 %v1530, %v1630
        %v1632 = vpop.f32.mrb[0].mxu0
        %v1633 = vpop.f32.mrb[0].mxu0
        %v1634 = vadd.f32 %v1530, %v1633
        %v1635 = vpop.f32.mrb[0].mxu0
        %1636 = vmatprep.mubr.bf16.mxu0 0
        %1637 = vmatmul.mubr.bf16.gmra.mrb[0].mxu0 %v1480
        %v1638 = vpop.f32.mrb[0].mxu0
        %v1639 = vadd.f32 %v1530, %v1638
        %v1640 = vpop.f32.mrb[0].mxu0
        %v1641 = vpop.f32.mrb[0].mxu0
        %v1642 = vadd.f32 %v1530, %v1641
        %v1643 = vpop.f32.mrb[0].mxu0
        %1644 = vmatprep.mubr.bf16.mxu0 0
        %1645 = vmatmul.mubr.bf16.gmra.mrb[0].mxu0 %v1481
        %v1646 = vpop.f32.mrb[0].mxu0
        %v1647 = vadd.f32 %v1530, %v1646
        %v1648 = vpop.f32.mrb[0].mxu0
        %v1649 = vpop.f32.mrb[0].mxu0
        %v1650 = vadd.f32 %v1530, %v1649
        %v1651 = vpop.f32.mrb[0].mxu0
        %1652 = vmatprep.mubr.bf16.mxu0 0
        %1653 = vmatmul.mubr.bf16.gmra.mrb[0].mxu0 %v1482
        %v1654 = vpop.f32.mrb[0].mxu0
        %v1655 = vadd.f32 %v1530, %v1654
        %v1656 = vpop.f32.mrb[0].mxu0
        %v1657 = vpop.f32.mrb[0].mxu0
        %v1658 = vadd.f32 %v1530, %v1657
        %v1659 = vpop.f32.mrb[0].mxu0
        %1660 = vmatprep.mubr.bf16.mxu0 0
        %1661 = vmatmul.mubr.bf16.gmra.mrb[0].mxu0 %v1483
        %v1662 = vpop.f32.mrb[0].mxu0
        %v1663 = vadd.f32 %v1530, %v1662
        %v1664 = vpop.f32.mrb[0].mxu0
        %v1665 = vpop.f32.mrb[0].mxu0
        %v1666 = vadd.f32 %v1530, %v1665
        %v1667 = vpop.f32.mrb[0].mxu0
        %1668 = vmatprep.mubr.bf16.mxu0 0
        %1669 = vmatmul.mubr.bf16.gmra.mrb[0].mxu0 %v1484
        %v1670 = vpop.f32.mrb[0].mxu0
        %v1671 = vadd.f32 %v1530, %v1670
        %v1672 = vpop.f32.mrb[0].mxu0
        %v1673 = vpop.f32.mrb[0].mxu0
        %v1674 = vadd.f32 %v1530, %v1673
        %v1675 = vpop.f32.mrb[0].mxu0
        %1676 = vmatprep.mubr.bf16.mxu0 0
        %1677 = vmatmul.mubr.bf16.gmra.mrb[0].mxu0 %v1485
        %v1678 = vpop.f32.mrb[0].mxu0
        %v1679 = vadd.f32 %v1530, %v1678
        %v1680 = vpop.f32.mrb[0].mxu0
        %v1681 = vpop.f32.mrb[0].mxu0
        %v1682 = vadd.f32 %v1530, %v1681
        %v1683 = vpop.f32.mrb[0].mxu0
        %1684 = vmatprep.mubr.bf16.mxu0 0
        %1685 = vmatmul.mubr.bf16.gmra.mrb[0].mxu0 %v1486
        %v1686 = vpop.f32.mrb[0].mxu0
        %v1687 = vadd.f32 %v1530, %v1686
        %v1688 = vpop.f32.mrb[0].mxu0
        %v1689 = vpop.f32.mrb[0].mxu0
        %v1690 = vadd.f32 %v1530, %v1689
        %v1691 = vpop.f32.mrb[0].mxu0
        %1692 = vmatprep.mubr.bf16.mxu0 0
        %1693 = vmatmul.mubr.bf16.gmra.mrb[0].mxu0 %v1487
        %v1694 = vpop.f32.mrb[0].mxu0
        %v1695 = vadd.f32 %v1530, %v1694
        %v1696 = vpop.f32.mrb[0].mxu0
        %v1697 = vpop.f32.mrb[0].mxu0
        %v1698 = vadd.f32 %v1530, %v1697
        %v1699 = vpop.f32.mrb[0].mxu0
        %1700 = vmatprep.mubr.bf16.mxu0 0
        %1701 = vmatmul.mubr.bf16.gmra.mrb[0].mxu0 %v1488
        %v1702 = vpop.f32.mrb[0].mxu0
        %v1703 = vadd.f32 %v1530, %v1702
        %v1704 = vpop.f32.mrb[0].mxu0
        %v1705 = vpop.f32.mrb[0].mxu0
        %v1706 = vadd.f32 %v1530, %v1705
        %v1707 = vpop.f32.mrb[0].mxu0
        %1708 = vmatprep.mubr.bf16.mxu0 0
        %1709 = vmatmul.mubr.bf16.gmra.mrb[0].mxu0 %v1489
        %v1710 = vpop.f32.mrb[0].mxu0
        %v1711 = vadd.f32 %v1530, %v1710
        %v1712 = vpop.f32.mrb[0].mxu0
        %v1713 = vpop.f32.mrb[0].mxu0
        %v1714 = vadd.f32 %v1530, %v1713
        %v1715 = vpop.f32.mrb[0].mxu0
        %1716 = vmatprep.mubr.bf16.mxu0 0
        %1717 = vmatmul.mubr.bf16.gmra.mrb[0].mxu0 %v1490
        %v1718 = vpop.f32.mrb[0].mxu0
        %v1719 = vadd.f32 %v1530, %v1718
        %v1720 = vpop.f32.mrb[0].mxu0
        %v1721 = vpop.f32.mrb[0].mxu0
        %v1722 = vadd.f32 %v1530, %v1721
        %v1723 = vpop.f32.mrb[0].mxu0
        %1724 = vmatprep.mubr.bf16.mxu0 0
        %1725 = vmatmul.mubr.bf16.gmra.mrb[0].mxu0 %v1491
        %v1726 = vpop.f32.mrb[0].mxu0
        %v1727 = vadd.f32 %v1530, %v1726
        %v1728 = vpop.f32.mrb[0].mxu0
        %v1729 = vpop.f32.mrb[0].mxu0
        %v1730 = vadd.f32 %v1530, %v1729
        %v1731 = vpop.f32.mrb[0].mxu0
        %1732 = vmatprep.mubr.bf16.mxu0 0
        %1733 = vmatmul.mubr.bf16.gmra.mrb[0].mxu0 %v1492
        %v1734 = vpop.f32.mrb[0].mxu0
        %v1735 = vadd.f32 %v1530, %v1734
        %v1736 = vpop.f32.mrb[0].mxu0
        %v1737 = vpop.f32.mrb[0].mxu0
        %v1738 = vadd.f32 %v1530, %v1737
        %v1739 = vpop.f32.mrb[0].mxu0
        %1740 = vmatprep.mubr.bf16.mxu0 0
        %1741 = vmatmul.mubr.bf16.gmra.mrb[0].mxu0 %v1493
        %v1742 = vpop.f32.mrb[0].mxu0
        %v1743 = vadd.f32 %v1530, %v1742
        %v1744 = vpop.f32.mrb[0].mxu0
        %v1745 = vpop.f32.mrb[0].mxu0
        %v1746 = vadd.f32 %v1530, %v1745
        %v1747 = vpop.f32.mrb[0].mxu0
        %1748 = vmatprep.mubr.bf16.mxu0 0
        %1749 = vmatmul.mubr.bf16.gmra.mrb[0].mxu0 %v1494
        %v1750 = vpop.f32.mrb[0].mxu0
        %v1751 = vadd.f32 %v1530, %v1750
        %v1752 = vpop.f32.mrb[0].mxu0
        %v1753 = vpop.f32.mrb[0].mxu0
        %v1754 = vadd.f32 %v1530, %v1753
        %v1755 = vpop.f32.mrb[0].mxu0
        %1756 = vmatprep.mubr.bf16.mxu0 0
        %1757 = vmatmul.mubr.bf16.gmra.mrb[0].mxu0 %v1495
        %v1758 = vpop.f32.mrb[0].mxu0
        %v1759 = vadd.f32 %v1530, %v1758
        %v1760 = vpop.f32.mrb[0].mxu0
        %v1761 = vpop.f32.mrb[0].mxu0
        %v1762 = vadd.f32 %v1530, %v1761
        %v1763 = vpop.f32.mrb[0].mxu0
        %1764 = vmatprep.mubr.bf16.mxu0 0
        %1765 = vmatmul.mubr.bf16.gmra.mrb[0].mxu0 %v1496
        %v1766 = vpop.f32.mrb[0].mxu0
        %v1767 = vadd.f32 %v1530, %v1766
        %v1768 = vpop.f32.mrb[0].mxu0
        %v1769 = vpop.f32.mrb[0].mxu0
        %v1770 = vadd.f32 %v1530, %v1769
        %v1771 = vpop.f32.mrb[0].mxu0
        %1772 = vmatprep.mubr.bf16.mxu0 0
        %1773 = vmatmul.mubr.bf16.gmra.mrb[0].mxu0 %v1497
        %v1774 = vpop.f32.mrb[0].mxu0
        %v1775 = vadd.f32 %v1530, %v1774
        %v1776 = vpop.f32.mrb[0].mxu0
        %v1777 = vpop.f32.mrb[0].mxu0
        %v1778 = vadd.f32 %v1530, %v1777
        %v1779 = vpop.f32.mrb[0].mxu0
        %1780 = vmatprep.mubr.bf16.mxu0 0
        %1781 = vmatmul.mubr.bf16.gmra.mrb[0].mxu0 %v1498
        %v1782 = vpop.f32.mrb[0].mxu0
        %v1783 = vadd.f32 %v1530, %v1782
        %v1784 = vpop.f32.mrb[0].mxu0
        %v1785 = vpop.f32.mrb[0].mxu0
        %v1786 = vadd.f32 %v1530, %v1785
        %v1787 = vpop.f32.mrb[0].mxu0
        %1788 = vmatprep.mubr.bf16.mxu0 0
        %1789 = vmatmul.mubr.bf16.gmra.mrb[0].mxu0 %v1499
        %v1790 = vpop.f32.mrb[0].mxu0
        %v1791 = vadd.f32 %v1530, %v1790
        %v1792 = vpop.f32.mrb[0].mxu0
        %v1793 = vpop.f32.mrb[0].mxu0
        %v1794 = vadd.f32 %v1530, %v1793
        %v1795 = vpop.f32.mrb[0].mxu0
        %1796 = vmatprep.mubr.bf16.mxu0 0
        %1797 = vmatmul.mubr.bf16.gmra.mrb[0].mxu0 %v1500
        %v1798 = vpop.f32.mrb[0].mxu0
        %v1799 = vadd.f32 %v1530, %v1798
        %v1800 = vpop.f32.mrb[0].mxu0
        %v1801 = vpop.f32.mrb[0].mxu0
        %v1802 = vadd.f32 %v1530, %v1801
        %v1803 = vpop.f32.mrb[0].mxu0
        %1804 = vmatprep.mubr.bf16.mxu0 0
        %1805 = vmatmul.mubr.bf16.gmra.mrb[0].mxu0 %v1501
        %v1806 = vpop.f32.mrb[0].mxu0
        %v1807 = vadd.f32 %v1530, %v1806
        %v1808 = vpop.f32.mrb[0].mxu0
        %v1809 = vpop.f32.mrb[0].mxu0
        %v1810 = vadd.f32 %v1530, %v1809
        %v1811 = vpop.f32.mrb[0].mxu0
        %1812 = vmatprep.mubr.bf16.mxu0 0
        %1813 = vmatmul.mubr.bf16.gmra.mrb[0].mxu0 %v1502
        %v1814 = vpop.f32.mrb[0].mxu0
        %v1815 = vadd.f32 %v1530, %v1814
        %v1816 = vpop.f32.mrb[0].mxu0
        %v1817 = vpop.f32.mrb[0].mxu0
        %v1818 = vadd.f32 %v1530, %v1817
        %v1819 = vpop.f32.mrb[0].mxu0
        %1820 = vmatprep.mubr.bf16.mxu0 0
        %1821 = vmatmul.mubr.bf16.gmra.mrb[0].mxu0 %v1503
        %v1822 = vpop.f32.mrb[0].mxu0
        %v1823 = vadd.f32 %v1530, %v1822
        %v1824 = vpop.f32.mrb[0].mxu0
        %v1825 = vpop.f32.mrb[0].mxu0
        %v1826 = vadd.f32 %v1530, %v1825
        %v1827 = vpop.f32.mrb[0].mxu0
        %1828 = vmatprep.mubr.bf16.mxu0 0
        %1829 = vmatmul.mubr.bf16.gmra.mrb[0].mxu0 %v1504
        %v1830 = vpop.f32.mrb[0].mxu0
        %v1831 = vadd.f32 %v1530, %v1830
        %v1832 = vpop.f32.mrb[0].mxu0
        %v1833 = vpop.f32.mrb[0].mxu0
        %v1834 = vadd.f32 %v1530, %v1833
        %v1835 = vpop.f32.mrb[0].mxu0
        %1836 = vmatprep.mubr.bf16.mxu0 0
        %1837 = vmatmul.mubr.bf16.gmra.mrb[0].mxu0 %v1505
        %v1838 = vpop.f32.mrb[0].mxu0
        %v1839 = vadd.f32 %v1530, %v1838
        %v1840 = vpop.f32.mrb[0].mxu0
        %v1841 = vpop.f32.mrb[0].mxu0
        %v1842 = vadd.f32 %v1530, %v1841
        %v1843 = vpop.f32.mrb[0].mxu0
        %1844 = vmatprep.mubr.bf16.mxu0 0
        %1845 = vmatmul.mubr.bf16.gmra.mrb[0].mxu0 %v1506
        %v1846 = vpop.f32.mrb[0].mxu0
        %v1847 = vadd.f32 %v1530, %v1846
        %v1848 = vpop.f32.mrb[0].mxu0
        %v1849 = vpop.f32.mrb[0].mxu0
        %v1850 = vadd.f32 %v1530, %v1849
        %v1851 = vpop.f32.mrb[0].mxu0
        %1852 = vmatprep.mubr.bf16.mxu0 0
        %1853 = vmatmul.mubr.bf16.gmra.mrb[0].mxu0 %v1507
        %v1854 = vpop.f32.mrb[0].mxu0
        %v1855 = vadd.f32 %v1530, %v1854
        %v1856 = vpop.f32.mrb[0].mxu0
        %v1857 = vpop.f32.mrb[0].mxu0
        %v1858 = vadd.f32 %v1530, %v1857
        %v1859 = vpop.f32.mrb[0].mxu0
        %1860 = vmatprep.mubr.bf16.mxu0 0
        %1861 = vmatmul.mubr.bf16.gmra.mrb[0].mxu0 %v1508
        %v1862 = vpop.f32.mrb[0].mxu0
        %v1863 = vadd.f32 %v1530, %v1862
        %v1864 = vpop.f32.mrb[0].mxu0
        %v1865 = vpop.f32.mrb[0].mxu0
        %v1866 = vadd.f32 %v1530, %v1865
        %v1867 = vpop.f32.mrb[0].mxu0
        %1868 = vdwg.mxu0
        %1869 = vst [vmem:[%s375] sm:$0xff] %v1615
        %1870 = vst [vmem:[%s375 + $0x8] sm:$0xff] %v1618
        %1871 = vst [vmem:[%s375 + $0x10] sm:$0xff] %v1623
        %1872 = vst [vmem:[%s375 + $0x18] sm:$0xff] %v1626
        %1873 = vst [vmem:[%s375 + $0x20] sm:$0xff] %v1631
        %1874 = vst [vmem:[%s375 + $0x28] sm:$0xff] %v1634
        %1875 = vst [vmem:[%s375 + $0x30] sm:$0xff] %v1639
        %1876 = vst [vmem:[%s375 + $0x38] sm:$0xff] %v1642
        %1877 = vst [vmem:[%s375 + $0x40] sm:$0xff] %v1647
        %1878 = vst [vmem:[%s375 + $0x48] sm:$0xff] %v1650
        %1879 = vst [vmem:[%s375 + $0x50] sm:$0xff] %v1655
        %1880 = vst [vmem:[%s375 + $0x58] sm:$0xff] %v1658
        %1881 = vst [vmem:[%s375 + $0x60] sm:$0xff] %v1663
        %1882 = vst [vmem:[%s375 + $0x68] sm:$0xff] %v1666
        %1883 = vst [vmem:[%s375 + $0x70] sm:$0xff] %v1671
        %1884 = vst [vmem:[%s375 + $0x78] sm:$0xff] %v1674
        %1885 = vst [vmem:[%s375 + $0x80] sm:$0xff] %v1679
        %1886 = vst [vmem:[%s375 + $0x88] sm:$0xff] %v1682
        %1887 = vst [vmem:[%s375 + $0x90] sm:$0xff] %v1687
        %1888 = vst [vmem:[%s375 + $0x98] sm:$0xff] %v1690
        %1889 = vst [vmem:[%s375 + $0xa0] sm:$0xff] %v1695
        %1890 = vst [vmem:[%s375 + $0xa8] sm:$0xff] %v1698
        %1891 = vst [vmem:[%s375 + $0xb0] sm:$0xff] %v1703
        %1892 = vst [vmem:[%s375 + $0xb8] sm:$0xff] %v1706
        %1893 = vst [vmem:[%s375 + $0xc0] sm:$0xff] %v1711
        %1894 = vst [vmem:[%s375 + $0xc8] sm:$0xff] %v1714
        %1895 = vst [vmem:[%s375 + $0xd0] sm:$0xff] %v1719
        %1896 = vst [vmem:[%s375 + $0xd8] sm:$0xff] %v1722
        %1897 = vst [vmem:[%s375 + $0xe0] sm:$0xff] %v1727
        %1898 = vst [vmem:[%s375 + $0xe8] sm:$0xff] %v1730
        %1899 = vst [vmem:[%s375 + $0xf0] sm:$0xff] %v1735
        %1900 = vst [vmem:[%s375 + $0xf8] sm:$0xff] %v1738
        %1901 = vst [vmem:[%s375 + $0x100] sm:$0xff] %v1743
        %1902 = vst [vmem:[%s375 + $0x108] sm:$0xff] %v1746
        %1903 = vst [vmem:[%s375 + $0x110] sm:$0xff] %v1751
        %1904 = vst [vmem:[%s375 + $0x118] sm:$0xff] %v1754
        %1905 = vst [vmem:[%s375 + $0x120] sm:$0xff] %v1759
        %1906 = vst [vmem:[%s375 + $0x128] sm:$0xff] %v1762
        %1907 = vst [vmem:[%s375 + $0x130] sm:$0xff] %v1767
        %1908 = vst [vmem:[%s375 + $0x138] sm:$0xff] %v1770
        %1909 = vst [vmem:[%s375 + $0x140] sm:$0xff] %v1775
        %1910 = vst [vmem:[%s375 + $0x148] sm:$0xff] %v1778
        %1911 = vst [vmem:[%s375 + $0x150] sm:$0xff] %v1783
        %1912 = vst [vmem:[%s375 + $0x158] sm:$0xff] %v1786
        %1913 = vst [vmem:[%s375 + $0x160] sm:$0xff] %v1791
        %1914 = vst [vmem:[%s375 + $0x168] sm:$0xff] %v1794
        %1915 = vst [vmem:[%s375 + $0x170] sm:$0xff] %v1799
        %1916 = vst [vmem:[%s375 + $0x178] sm:$0xff] %v1802
        %1917 = vst [vmem:[%s375 + $0x180] sm:$0xff] %v1807
        %1918 = vst [vmem:[%s375 + $0x188] sm:$0xff] %v1810
        %1919 = vst [vmem:[%s375 + $0x190] sm:$0xff] %v1815
        %1920 = vst [vmem:[%s375 + $0x198] sm:$0xff] %v1818
        %1921 = vst [vmem:[%s375 + $0x1a0] sm:$0xff] %v1823
        %1922 = vst [vmem:[%s375 + $0x1a8] sm:$0xff] %v1826
        %1923 = vst [vmem:[%s375 + $0x1b0] sm:$0xff] %v1831
        %1924 = vst [vmem:[%s375 + $0x1b8] sm:$0xff] %v1834
        %1925 = vst [vmem:[%s375 + $0x1c0] sm:$0xff] %v1839
        %1926 = vst [vmem:[%s375 + $0x1c8] sm:$0xff] %v1842
        %1927 = vst [vmem:[%s375 + $0x1d0] sm:$0xff] %v1847
        %1928 = vst [vmem:[%s375 + $0x1d8] sm:$0xff] %v1850
        %1929 = vst [vmem:[%s375 + $0x1e0] sm:$0xff] %v1855
        %1930 = vst [vmem:[%s375 + $0x1e8] sm:$0xff] %v1858
        %1931 = vst [vmem:[%s375 + $0x1f0] sm:$0xff] %v1863
        %1932 = vst [vmem:[%s375 + $0x1f8] sm:$0xff] %v1866
        %s1933 = sand.u32 %s188, 1
        %s1934 = scalar_lea.sflag [#allocation5], %s1933
        %s1935 = sand.u32 %s188, 1
        %s1936 = smul.addr %s1935, 512
        %s1937 = scalar_lea.vmem [#allocation14], %s1936
        // Predicated region
        $region73: #{final_layer_forward.1} parent=43 // pred_check
          %p1938 = pneg %p198
        $region74: #{final_layer_forward.1} parent=43 // pred_check_branch
          %1940 = sbr.rel (%p1938) target = $region76
        $region75: #{final_layer_forward.1} parent=43 // pred_region
          %s1941 = smul.u32 64, %s33
          %s1943 = ssub.s32 8192, 8192
          %1944 = vsyncadd %s1934, %s1943
          %s1945 = smul.addr %s32, 64
          %s1946 = sadd.s32 %s1941, %s1945
          %s1947 = smul.addr %s1946, 128
          %s1948 = scalar_lea.hbm %s6, %s1947
          %s1949 = sshll.u32 %s1937, 4
          %s1950 = int_to_ptr.vmem [resolvable:$true] %s1949
          %1955 = dma.vmem_to_hbm [thread:$0]  %s1950, 8192, %s1948, %s1934, 128, 128, 8
        $region76: #{final_layer_forward.1} parent=43 // pred_fallthru
          _
      $region44: #{final_layer_forward.1} parent=5 // pred_fallthru
        _
      %p1956 = scmp.le.s32.totalorder 2, %s23
      // Predicated region
      $region77: #{final_layer_forward.1} parent=5 // pred_check
        %p1957 = pneg %p1956
      $region78: #{final_layer_forward.1} parent=5 // pred_check_branch
        %1959 = sbr.rel (%p1957) target = $region80
      $region79: #{final_layer_forward.1} parent=5 // pred_region
        %s1960 = ssub.s32 %s23, 2
        // Predicated region
        $region81: #{final_layer_forward.1} parent=79 // pred_check
          %p1961 = pneg %p204
        $region82: #{final_layer_forward.1} parent=79 // pred_check_branch
          %1963 = sbr.rel (%p1961) target = $region84
        $region83: #{final_layer_forward.1} parent=79 // pred_region
          %s1964 = sand.u32 %s189, 1
          %s1965 = scalar_lea.sflag [#allocation5], %s1964
          %s1966 = sand.u32 %s189, 1
          %s1967 = smul.addr %s1966, 512
          %s1968 = scalar_lea.vmem [#allocation14], %s1967
          %1969 = dma.done %s1965, 8192
        $region84: #{final_layer_forward.1} parent=79 // pred_fallthru
          _
      $region80: #{final_layer_forward.1} parent=5 // pred_fallthru
        _
    $region6: #{final_layer_forward.1} parent=1 // loop_footer
      %s27 = sadd.s32 1, %s23
    $region7: #{final_layer_forward.1} parent=1 // loop_footer_branch
      %22 = sbr.rel target = $region3
    $region8: #{final_layer_forward.1} parent=1 // loop_exit
      _
    %1970 = vsyncpa [#allocation4], 1
    %s1971 = scalar_lea.sflag [#allocation4], 1
    %1972 = vsyncpa %s1971, 1
    %1973 = vsyncpa [#allocation7], 1
    %1974 = vsyncpa [#allocation10], 1
    %s1975 = scalar_lea.sflag [#allocation10], 1
    %1976 = vsyncpa %s1975, 1
    %1977 = vsyncpa [#allocation13], 1
    %1978 = vsyncpa [#allocation5], 1
    %s1979 = scalar_lea.sflag [#allocation5], 1
    %1980 = vsyncpa %s1979, 1

</llo_original>
